<compile_context>
chip_gen: v6e
topology: v6e:2x2x1
jax: 0.10.0
libtpu: 0.0.40
codegen_flags: <defaults>
</compile_context>

<pallas_src>
import functools

import jax
import jax.numpy as jnp
from jax.experimental import pallas as pl
from jax.experimental.pallas import tpu as pltpu

# ----------------------------- config ---------------------------------------
BATCH_SIZE = 2
MAX_SEQ_LEN = 8
EMBEDDING_DIM = 32
HIDDEN_SIZE = 32
VOCAB_SIZE = 20
PW_EPS = 1e-6  # torch.nn.PairwiseDistance default eps (added to the difference)
BP = 8         # batch rows padded to one full sublane tile

# Torch packs LSTM gates as (i, f, g, o); the kernel regroups columns to
# (i, f, o, g) so the three sigmoid gates are one contiguous lane range.
GATE_PERM = (0, 1, 3, 2)


# ----------------------------- kernel ---------------------------------------
def malstm_kernel(tok_ref, zin_tab_ref, w_hh_ref, b_ref, out_ref, zin_scr,
                  *, seq_len, batch, hidden, vocab):
    """Whole MaLSTM forward (both towers + exp-neg-L1) in one invocation.

    tok_ref    : SMEM (B*2*T,) int32   flattened (B, 2, T) token ids
    zin_tab_ref: VMEM (2V, 1, 8H) f32  per-token fused input-projection table
                                       (rows 0:V left tower, V:2V right tower)
    w_hh_ref   : VMEM (2H, 8H)  f32    block-diag fused recurrence weights
    b_ref      : VMEM (1, 8H)   f32    fused b_ih + b_hh of both towers
    out_ref    : VMEM (B, 1)    f32    exp(-||h_left - h_right + eps||_1)
    zin_scr    : VMEM (T*8, 8H) f32    hoisted per-step gate pre-activations
    """
    T, B, H, V = seq_len, batch, hidden, vocab
    G = 2 * H          # one gate group: [left H | right H] lanes
    GZ = 4 * G         # all four gate groups (8H lanes)

    bias_row = b_ref[...]                                    # (1, GZ)

    # --- hoisted input projection: per-token table gather -------------------
    # Row (t*8 + b) of zin_scr = bias + tab[tok_left] + tab[V + tok_right].
    # Padding rows (b >= B) get bias only; their state never mixes with real
    # rows because the recurrence is row-independent.
    zin_scr[...] = jnp.broadcast_to(bias_row, (T * BP, GZ))
    for t in range(T):
        for b in range(B):
            tl = tok_ref[b * 2 * T + t]                      # left  token id
            tr = tok_ref[b * 2 * T + T + t]                  # right token id
            r = t * BP + b
            zin_scr[r:r + 1, :] = (bias_row
                                   + zin_tab_ref[tl]         # (1, GZ) left
                                   + zin_tab_ref[V + tr])    # (1, GZ) right

    # --- recurrence: fully unrolled, ONE matmul per step for both towers ----
    # TODO(synk): hold w_hh in the MXU across steps (matmul_push_rhs once,
    # matmul_acc_lhs/matmul_pop per step) to drop the per-step RHS re-push.
    w_hh = w_hh_ref[...]                                     # (2H, GZ)
    h = jnp.zeros((BP, G), jnp.float32)                      # packed [h_l|h_r]
    c = jnp.zeros((BP, G), jnp.float32)
    for t in range(T):
        z = zin_scr[t * BP:(t + 1) * BP, :] + jnp.dot(
            h, w_hh, preferred_element_type=jnp.float32)     # (8, GZ)
        sig = jax.nn.sigmoid(z[:, :3 * G])                   # i | f | o at once
        i = sig[:, 0 * G:1 * G]
        f = sig[:, 1 * G:2 * G]
        o = sig[:, 2 * G:3 * G]
        g = jnp.tanh(z[:, 3 * G:])
        c = f * c + i * g
        h = o * jnp.tanh(c)

    # --- epilogue: exp(-PairwiseDistance(p=1)(h_left, h_right)) -------------
    hl = h[:, :H]
    hr = h[:, H:]
    diff = hl - hr + PW_EPS                       # eps added to the difference
    dist = jnp.sum(jnp.abs(diff), axis=-1, keepdims=True)    # (8, 1)
    out_ref[...] = jnp.exp(-dist)[:B, :]
    # TODO(synk): if B ever grows, emit a lane-dense output slab (batch on the
    # lane axis, padded to 128) instead of this tiny masked (B, 1) store.


# ---------------------- parameter-only precomputation ------------------------
def _fuse_block_diag(wl, wr, hidden):
    """Fuse two towers' (K, 4H) transposed weights into a block-diagonal
    (2K, 8H) matrix whose columns are gate-reordered tower-packed groups
    [i_l i_r | f_l f_r | o_l o_r | g_l g_r]."""
    K = wl.shape[0]
    wl4 = wl.reshape(K, 4, hidden)[:, GATE_PERM, :]
    wr4 = wr.reshape(K, 4, hidden)[:, GATE_PERM, :]
    top = jnp.concatenate([wl4, jnp.zeros_like(wl4)], axis=-1)  # left rows
    bot = jnp.concatenate([jnp.zeros_like(wr4), wr4], axis=-1)  # right rows
    return jnp.concatenate([top, bot], axis=0).reshape(2 * K, 8 * hidden)


def _fuse_bias(bl, br, hidden):
    """(1, 4H) x2 -> (1, 8H) in the fused, gate-reordered group layout."""
    bl4 = bl.reshape(1, 4, hidden)[:, GATE_PERM, :]
    br4 = br.reshape(1, 4, hidden)[:, GATE_PERM, :]
    return jnp.concatenate([bl4, br4], axis=-1).reshape(1, 8 * hidden)


def prepare_fused_params(params, embeddings):
    """One-time, parameter-only constants (NOT in the per-call path).

    Because the embedding table is frozen, the whole input projection
    emb @ W_ih^T is folded into a per-token table: row v (resp. V+v) is the
    fused gate-space contribution of token v through the left (resp. right)
    tower.  The in-kernel "embedding + input matmul" becomes two row gathers.
    """
    H = params["wl_hh_t"].shape[0]
    V = embeddings.shape[0]
    zin_l = embeddings @ params["wl_ih_t"]            # (V, 4H)
    zin_r = embeddings @ params["wr_ih_t"]            # (V, 4H)
    zin_tab = _fuse_block_diag(zin_l, zin_r, H)       # (2V, 8H)
    return {
        # leading-dim layout so the in-kernel gather indexes an untiled axis
        "zin_tab": zin_tab.reshape(2 * V, 1, 8 * H),
        "w_hh": _fuse_block_diag(params["wl_hh_t"], params["wr_hh_t"], H),
        "bias": _fuse_bias(params["bl"], params["br"], H),
    }


# ----------------------------- wrapper ---------------------------------------
def malstm_pallas(tokens, fused):
    """tokens: (B, 2, T) int32 padded token ids; fused: precomputed constants."""
    B, two, T = tokens.shape
    assert two == 2 and B <= BP
    V2, _, GZ = fused["zin_tab"].shape
    H, V = GZ // 8, V2 // 2

    kernel = functools.partial(malstm_kernel, seq_len=T, batch=B,
                               hidden=H, vocab=V)
    out = pl.pallas_call(
        kernel,
        out_shape=jax.ShapeDtypeStruct((B, 1), jnp.float32),
        in_specs=[pl.BlockSpec(memory_space=pltpu.MemorySpace.SMEM),   # tokens
                  pl.BlockSpec(memory_space=pltpu.MemorySpace.VMEM),   # zin_tab
                  pl.BlockSpec(memory_space=pltpu.MemorySpace.VMEM),   # w_hh
                  pl.BlockSpec(memory_space=pltpu.MemorySpace.VMEM)],  # bias
        out_specs=pl.BlockSpec(memory_space=pltpu.MemorySpace.VMEM),
        scratch_shapes=[pltpu.VMEM((T * BP, GZ), jnp.float32)],
    )(tokens.reshape(-1), fused["zin_tab"], fused["w_hh"], fused["bias"])
    return out[:, 0]  # (B,)


# ----------------------------- glue / reference ------------------------------
def encode(tokens, embeddings):
    """tokens (B, T) int32 -> (T, B, E) float32 time-major encoded sequence."""
    x = embeddings[tokens]                  # (B, T, E)
    return jnp.transpose(x, (1, 0, 2))      # (T, B, E)


def _lstm_cell_ref(x, w_ih_t, w_hh_t, b, h, c, hidden):
    z = x @ w_ih_t + h @ w_hh_t + b
    i = jax.nn.sigmoid(z[:, 0 * hidden:1 * hidden])
    f = jax.nn.sigmoid(z[:, 1 * hidden:2 * hidden])
    g = jnp.tanh(z[:, 2 * hidden:3 * hidden])
    o = jax.nn.sigmoid(z[:, 3 * hidden:4 * hidden])
    c_new = f * c + i * g
    h_new = o * jnp.tanh(c_new)
    return h_new, c_new


def malstm_reference(tokens, embeddings, params):
    """Pure-JAX reference (embedding lookup + lax.scan LSTMs, unfused towers)."""
    xl = encode(tokens[:, 0, :], embeddings)   # (T, B, E)
    xr = encode(tokens[:, 1, :], embeddings)
    H = params["wl_hh_t"].shape[0]
    B = xl.shape[1]

    def run(x, w_ih_t, w_hh_t, b):
        def step(carry, xt):
            h, c = carry
            h, c = _lstm_cell_ref(xt, w_ih_t, w_hh_t, b, h, c, H)
            return (h, c), None
        init = (jnp.zeros((B, H), jnp.float32), jnp.zeros((B, H), jnp.float32))
        (h, _), _ = jax.lax.scan(step, init, x)
        return h

    hl = run(xl, params["wl_ih_t"], params["wl_hh_t"], params["bl"])
    hr = run(xr, params["wr_ih_t"], params["wr_hh_t"], params["br"])
    return jnp.exp(-jnp.sum(jnp.abs(hl - hr + PW_EPS), axis=-1))


def init_params(key, emb_dim, hidden):
    """Deterministic LSTM params, PyTorch-style uniform(-1/sqrt(H), 1/sqrt(H))."""
    ks = jax.random.split(key, 8)
    bound = 1.0 / jnp.sqrt(hidden)
    u = lambda k, shape: jax.random.uniform(k, shape, jnp.float32, -bound, bound)
    return {
        "wl_ih_t": u(ks[0], (emb_dim, 4 * hidden)),
        "wl_hh_t": u(ks[1], (hidden, 4 * hidden)),
        "bl": u(ks[2], (1, 4 * hidden)) + u(ks[3], (1, 4 * hidden)),  # b_ih+b_hh
        "wr_ih_t": u(ks[4], (emb_dim, 4 * hidden)),
        "wr_hh_t": u(ks[5], (hidden, 4 * hidden)),
        "br": u(ks[6], (1, 4 * hidden)) + u(ks[7], (1, 4 * hidden)),
    }


# ----------------------------- main ------------------------------------------
if __name__ == "__main__":
    key = jax.random.PRNGKey(0)
    k_emb, k_tok, k_par = jax.random.split(key, 3)

    # Frozen embedding table (stands in for the numpy `embeddings` argument).
    embeddings = jax.random.normal(k_emb, (VOCAB_SIZE, EMBEDDING_DIM),
                                   dtype=jnp.float32)

    # X_batch: (B, 2, T) token ids; left-padding with id 0 already applied.
    tokens = jax.random.randint(k_tok, (BATCH_SIZE, 2, MAX_SEQ_LEN),
                                1, VOCAB_SIZE, dtype=jnp.int32)
    tokens = tokens.at[:, :, :2].set(0)  # simulate padding_input() left-pad

    params = init_params(k_par, EMBEDDING_DIM, HIDDEN_SIZE)

    # One-time parameter/embedding fusion (outside the per-call hot path).
    fused = prepare_fused_params(params, embeddings)

    pallas_fn = jax.jit(malstm_pallas)
    ref_fn = jax.jit(malstm_reference)

    out = jax.block_until_ready(pallas_fn(tokens, fused))
    ref = jax.block_until_ready(ref_fn(tokens, embeddings, params))

    assert out.shape == (BATCH_SIZE,)
    assert jnp.allclose(out, ref, atol=1e-4, rtol=1e-4), (out, ref)
    print("KERNEL_OK")
</pallas_src>

<mosaic_0001>
module attributes {stable_mosaic.version = 11 : i64} {
  func.func @malstm_kernel(%arg0: memref<32xi32, #tpu.memory_space<smem>>, %arg1: memref<40x1x256xf32, #tpu.memory_space<vmem>>, %arg2: memref<64x256xf32, #tpu.memory_space<vmem>>, %arg3: memref<1x256xf32, #tpu.memory_space<vmem>>, %arg4: memref<2x1xf32, #tpu.memory_space<vmem>>, %arg5: memref<64x256xf32, #tpu.memory_space<vmem>>) attributes {dimension_semantics = [], scalar_prefetch = 0 : i64, scratch_operands = 1 : i64, tpu.core_type = #tpu.core_type<tc>} {
    %c0 = arith.constant 0 : index
    %c0_0 = arith.constant 0 : index
    %0 = vector.load %arg3[%c0, %c0_0] : memref<1x256xf32, #tpu.memory_space<vmem>>, vector<1x256xf32>
    %1 = vector.shape_cast %0 : vector<1x256xf32> to vector<1x256xf32>
    %2 = vector.broadcast %1 : vector<1x256xf32> to vector<64x256xf32>
    %c0_1 = arith.constant 0 : index
    %c0_2 = arith.constant 0 : index
    %3 = vector.load %arg5[%c0_1, %c0_2] : memref<64x256xf32, #tpu.memory_space<vmem>>, vector<64x256xf32>
    tpu.vector_store %arg5[%c0_1, %c0_2], %2 {strides = array<i32>} : memref<64x256xf32, #tpu.memory_space<vmem>>, vector<64x256xf32>,
    %c0_3 = arith.constant 0 : index
    %4 = memref.load %arg0[%c0_3] : memref<32xi32, #tpu.memory_space<smem>>
    %c8 = arith.constant 8 : index
    %5 = memref.load %arg0[%c8] : memref<32xi32, #tpu.memory_space<smem>>
    %6 = arith.index_cast %4 : i32 to index
    %c0_4 = arith.constant 0 : index
    %c0_5 = arith.constant 0 : index
    %7 = vector.load %arg1[%6, %c0_4, %c0_5] : memref<40x1x256xf32, #tpu.memory_space<vmem>>, vector<1x1x256xf32>
    %8 = vector.shape_cast %7 : vector<1x1x256xf32> to vector<1x256xf32>
    %9 = arith.addf %0, %8 : vector<1x256xf32>
    %c20_i32 = arith.constant 20 : i32
    %10 = arith.addi %c20_i32, %5 : i32
    %11 = arith.index_cast %10 : i32 to index
    %c0_6 = arith.constant 0 : index
    %c0_7 = arith.constant 0 : index
    %12 = vector.load %arg1[%11, %c0_6, %c0_7] : memref<40x1x256xf32, #tpu.memory_space<vmem>>, vector<1x1x256xf32>
    %13 = vector.shape_cast %12 : vector<1x1x256xf32> to vector<1x256xf32>
    %14 = arith.addf %9, %13 : vector<1x256xf32>
    %c0_8 = arith.constant 0 : index
    %c0_9 = arith.constant 0 : index
    %15 = vector.load %arg5[%c0_8, %c0_9] : memref<64x256xf32, #tpu.memory_space<vmem>>, vector<1x256xf32>
    tpu.vector_store %arg5[%c0_8, %c0_9], %14 {strides = array<i32>} : memref<64x256xf32, #tpu.memory_space<vmem>>, vector<1x256xf32>,
    %c16 = arith.constant 16 : index
    %16 = memref.load %arg0[%c16] : memref<32xi32, #tpu.memory_space<smem>>
    %c24 = arith.constant 24 : index
    %17 = memref.load %arg0[%c24] : memref<32xi32, #tpu.memory_space<smem>>
    %18 = arith.index_cast %16 : i32 to index
    %c0_10 = arith.constant 0 : index
    %c0_11 = arith.constant 0 : index
    %19 = vector.load %arg1[%18, %c0_10, %c0_11] : memref<40x1x256xf32, #tpu.memory_space<vmem>>, vector<1x1x256xf32>
    %20 = vector.shape_cast %19 : vector<1x1x256xf32> to vector<1x256xf32>
    %21 = arith.addf %0, %20 : vector<1x256xf32>
    %c20_i32_12 = arith.constant 20 : i32
    %22 = arith.addi %c20_i32_12, %17 : i32
    %23 = arith.index_cast %22 : i32 to index
    %c0_13 = arith.constant 0 : index
    %c0_14 = arith.constant 0 : index
    %24 = vector.load %arg1[%23, %c0_13, %c0_14] : memref<40x1x256xf32, #tpu.memory_space<vmem>>, vector<1x1x256xf32>
    %25 = vector.shape_cast %24 : vector<1x1x256xf32> to vector<1x256xf32>
    %26 = arith.addf %21, %25 : vector<1x256xf32>
    %c1 = arith.constant 1 : index
    %c0_15 = arith.constant 0 : index
    %27 = vector.load %arg5[%c1, %c0_15] : memref<64x256xf32, #tpu.memory_space<vmem>>, vector<1x256xf32>
    tpu.vector_store %arg5[%c1, %c0_15], %26 {strides = array<i32>} : memref<64x256xf32, #tpu.memory_space<vmem>>, vector<1x256xf32>,
    %c1_16 = arith.constant 1 : index
    %28 = memref.load %arg0[%c1_16] : memref<32xi32, #tpu.memory_space<smem>>
    %c9 = arith.constant 9 : index
    %29 = memref.load %arg0[%c9] : memref<32xi32, #tpu.memory_space<smem>>
    %30 = arith.index_cast %28 : i32 to index
    %c0_17 = arith.constant 0 : index
    %c0_18 = arith.constant 0 : index
    %31 = vector.load %arg1[%30, %c0_17, %c0_18] : memref<40x1x256xf32, #tpu.memory_space<vmem>>, vector<1x1x256xf32>
    %32 = vector.shape_cast %31 : vector<1x1x256xf32> to vector<1x256xf32>
    %33 = arith.addf %0, %32 : vector<1x256xf32>
    %c20_i32_19 = arith.constant 20 : i32
    %34 = arith.addi %c20_i32_19, %29 : i32
    %35 = arith.index_cast %34 : i32 to index
    %c0_20 = arith.constant 0 : index
    %c0_21 = arith.constant 0 : index
    %36 = vector.load %arg1[%35, %c0_20, %c0_21] : memref<40x1x256xf32, #tpu.memory_space<vmem>>, vector<1x1x256xf32>
    %37 = vector.shape_cast %36 : vector<1x1x256xf32> to vector<1x256xf32>
    %38 = arith.addf %33, %37 : vector<1x256xf32>
    %c8_22 = arith.constant 8 : index
    %c0_23 = arith.constant 0 : index
    %39 = vector.load %arg5[%c8_22, %c0_23] : memref<64x256xf32, #tpu.memory_space<vmem>>, vector<1x256xf32>
    tpu.vector_store %arg5[%c8_22, %c0_23], %38 {strides = array<i32>} : memref<64x256xf32, #tpu.memory_space<vmem>>, vector<1x256xf32>,
    %c17 = arith.constant 17 : index
    %40 = memref.load %arg0[%c17] : memref<32xi32, #tpu.memory_space<smem>>
    %c25 = arith.constant 25 : index
    %41 = memref.load %arg0[%c25] : memref<32xi32, #tpu.memory_space<smem>>
    %42 = arith.index_cast %40 : i32 to index
    %c0_24 = arith.constant 0 : index
    %c0_25 = arith.constant 0 : index
    %43 = vector.load %arg1[%42, %c0_24, %c0_25] : memref<40x1x256xf32, #tpu.memory_space<vmem>>, vector<1x1x256xf32>
    %44 = vector.shape_cast %43 : vector<1x1x256xf32> to vector<1x256xf32>
    %45 = arith.addf %0, %44 : vector<1x256xf32>
    %c20_i32_26 = arith.constant 20 : i32
    %46 = arith.addi %c20_i32_26, %41 : i32
    %47 = arith.index_cast %46 : i32 to index
    %c0_27 = arith.constant 0 : index
    %c0_28 = arith.constant 0 : index
    %48 = vector.load %arg1[%47, %c0_27, %c0_28] : memref<40x1x256xf32, #tpu.memory_space<vmem>>, vector<1x1x256xf32>
    %49 = vector.shape_cast %48 : vector<1x1x256xf32> to vector<1x256xf32>
    %50 = arith.addf %45, %49 : vector<1x256xf32>
    %c9_29 = arith.constant 9 : index
    %c0_30 = arith.constant 0 : index
    %51 = vector.load %arg5[%c9_29, %c0_30] : memref<64x256xf32, #tpu.memory_space<vmem>>, vector<1x256xf32>
    tpu.vector_store %arg5[%c9_29, %c0_30], %50 {strides = array<i32>} : memref<64x256xf32, #tpu.memory_space<vmem>>, vector<1x256xf32>,
    %c2 = arith.constant 2 : index
    %52 = memref.load %arg0[%c2] : memref<32xi32, #tpu.memory_space<smem>>
    %c10 = arith.constant 10 : index
    %53 = memref.load %arg0[%c10] : memref<32xi32, #tpu.memory_space<smem>>
    %54 = arith.index_cast %52 : i32 to index
    %c0_31 = arith.constant 0 : index
    %c0_32 = arith.constant 0 : index
    %55 = vector.load %arg1[%54, %c0_31, %c0_32] : memref<40x1x256xf32, #tpu.memory_space<vmem>>, vector<1x1x256xf32>
    %56 = vector.shape_cast %55 : vector<1x1x256xf32> to vector<1x256xf32>
    %57 = arith.addf %0, %56 : vector<1x256xf32>
    %c20_i32_33 = arith.constant 20 : i32
    %58 = arith.addi %c20_i32_33, %53 : i32
    %59 = arith.index_cast %58 : i32 to index
    %c0_34 = arith.constant 0 : index
    %c0_35 = arith.constant 0 : index
    %60 = vector.load %arg1[%59, %c0_34, %c0_35] : memref<40x1x256xf32, #tpu.memory_space<vmem>>, vector<1x1x256xf32>
    %61 = vector.shape_cast %60 : vector<1x1x256xf32> to vector<1x256xf32>
    %62 = arith.addf %57, %61 : vector<1x256xf32>
    %c16_36 = arith.constant 16 : index
    %c0_37 = arith.constant 0 : index
    %63 = vector.load %arg5[%c16_36, %c0_37] : memref<64x256xf32, #tpu.memory_space<vmem>>, vector<1x256xf32>
    tpu.vector_store %arg5[%c16_36, %c0_37], %62 {strides = array<i32>} : memref<64x256xf32, #tpu.memory_space<vmem>>, vector<1x256xf32>,
    %c18 = arith.constant 18 : index
    %64 = memref.load %arg0[%c18] : memref<32xi32, #tpu.memory_space<smem>>
    %c26 = arith.constant 26 : index
    %65 = memref.load %arg0[%c26] : memref<32xi32, #tpu.memory_space<smem>>
    %66 = arith.index_cast %64 : i32 to index
    %c0_38 = arith.constant 0 : index
    %c0_39 = arith.constant 0 : index
    %67 = vector.load %arg1[%66, %c0_38, %c0_39] : memref<40x1x256xf32, #tpu.memory_space<vmem>>, vector<1x1x256xf32>
    %68 = vector.shape_cast %67 : vector<1x1x256xf32> to vector<1x256xf32>
    %69 = arith.addf %0, %68 : vector<1x256xf32>
    %c20_i32_40 = arith.constant 20 : i32
    %70 = arith.addi %c20_i32_40, %65 : i32
    %71 = arith.index_cast %70 : i32 to index
    %c0_41 = arith.constant 0 : index
    %c0_42 = arith.constant 0 : index
    %72 = vector.load %arg1[%71, %c0_41, %c0_42] : memref<40x1x256xf32, #tpu.memory_space<vmem>>, vector<1x1x256xf32>
    %73 = vector.shape_cast %72 : vector<1x1x256xf32> to vector<1x256xf32>
    %74 = arith.addf %69, %73 : vector<1x256xf32>
    %c17_43 = arith.constant 17 : index
    %c0_44 = arith.constant 0 : index
    %75 = vector.load %arg5[%c17_43, %c0_44] : memref<64x256xf32, #tpu.memory_space<vmem>>, vector<1x256xf32>
    tpu.vector_store %arg5[%c17_43, %c0_44], %74 {strides = array<i32>} : memref<64x256xf32, #tpu.memory_space<vmem>>, vector<1x256xf32>,
    %c3 = arith.constant 3 : index
    %76 = memref.load %arg0[%c3] : memref<32xi32, #tpu.memory_space<smem>>
    %c11 = arith.constant 11 : index
    %77 = memref.load %arg0[%c11] : memref<32xi32, #tpu.memory_space<smem>>
    %78 = arith.index_cast %76 : i32 to index
    %c0_45 = arith.constant 0 : index
    %c0_46 = arith.constant 0 : index
    %79 = vector.load %arg1[%78, %c0_45, %c0_46] : memref<40x1x256xf32, #tpu.memory_space<vmem>>, vector<1x1x256xf32>
    %80 = vector.shape_cast %79 : vector<1x1x256xf32> to vector<1x256xf32>
    %81 = arith.addf %0, %80 : vector<1x256xf32>
    %c20_i32_47 = arith.constant 20 : i32
    %82 = arith.addi %c20_i32_47, %77 : i32
    %83 = arith.index_cast %82 : i32 to index
    %c0_48 = arith.constant 0 : index
    %c0_49 = arith.constant 0 : index
    %84 = vector.load %arg1[%83, %c0_48, %c0_49] : memref<40x1x256xf32, #tpu.memory_space<vmem>>, vector<1x1x256xf32>
    %85 = vector.shape_cast %84 : vector<1x1x256xf32> to vector<1x256xf32>
    %86 = arith.addf %81, %85 : vector<1x256xf32>
    %c24_50 = arith.constant 24 : index
    %c0_51 = arith.constant 0 : index
    %87 = vector.load %arg5[%c24_50, %c0_51] : memref<64x256xf32, #tpu.memory_space<vmem>>, vector<1x256xf32>
    tpu.vector_store %arg5[%c24_50, %c0_51], %86 {strides = array<i32>} : memref<64x256xf32, #tpu.memory_space<vmem>>, vector<1x256xf32>,
    %c19 = arith.constant 19 : index
    %88 = memref.load %arg0[%c19] : memref<32xi32, #tpu.memory_space<smem>>
    %c27 = arith.constant 27 : index
    %89 = memref.load %arg0[%c27] : memref<32xi32, #tpu.memory_space<smem>>
    %90 = arith.index_cast %88 : i32 to index
    %c0_52 = arith.constant 0 : index
    %c0_53 = arith.constant 0 : index
    %91 = vector.load %arg1[%90, %c0_52, %c0_53] : memref<40x1x256xf32, #tpu.memory_space<vmem>>, vector<1x1x256xf32>
    %92 = vector.shape_cast %91 : vector<1x1x256xf32> to vector<1x256xf32>
    %93 = arith.addf %0, %92 : vector<1x256xf32>
    %c20_i32_54 = arith.constant 20 : i32
    %94 = arith.addi %c20_i32_54, %89 : i32
    %95 = arith.index_cast %94 : i32 to index
    %c0_55 = arith.constant 0 : index
    %c0_56 = arith.constant 0 : index
    %96 = vector.load %arg1[%95, %c0_55, %c0_56] : memref<40x1x256xf32, #tpu.memory_space<vmem>>, vector<1x1x256xf32>
    %97 = vector.shape_cast %96 : vector<1x1x256xf32> to vector<1x256xf32>
    %98 = arith.addf %93, %97 : vector<1x256xf32>
    %c25_57 = arith.constant 25 : index
    %c0_58 = arith.constant 0 : index
    %99 = vector.load %arg5[%c25_57, %c0_58] : memref<64x256xf32, #tpu.memory_space<vmem>>, vector<1x256xf32>
    tpu.vector_store %arg5[%c25_57, %c0_58], %98 {strides = array<i32>} : memref<64x256xf32, #tpu.memory_space<vmem>>, vector<1x256xf32>,
    %c4 = arith.constant 4 : index
    %100 = memref.load %arg0[%c4] : memref<32xi32, #tpu.memory_space<smem>>
    %c12 = arith.constant 12 : index
    %101 = memref.load %arg0[%c12] : memref<32xi32, #tpu.memory_space<smem>>
    %102 = arith.index_cast %100 : i32 to index
    %c0_59 = arith.constant 0 : index
    %c0_60 = arith.constant 0 : index
    %103 = vector.load %arg1[%102, %c0_59, %c0_60] : memref<40x1x256xf32, #tpu.memory_space<vmem>>, vector<1x1x256xf32>
    %104 = vector.shape_cast %103 : vector<1x1x256xf32> to vector<1x256xf32>
    %105 = arith.addf %0, %104 : vector<1x256xf32>
    %c20_i32_61 = arith.constant 20 : i32
    %106 = arith.addi %c20_i32_61, %101 : i32
    %107 = arith.index_cast %106 : i32 to index
    %c0_62 = arith.constant 0 : index
    %c0_63 = arith.constant 0 : index
    %108 = vector.load %arg1[%107, %c0_62, %c0_63] : memref<40x1x256xf32, #tpu.memory_space<vmem>>, vector<1x1x256xf32>
    %109 = vector.shape_cast %108 : vector<1x1x256xf32> to vector<1x256xf32>
    %110 = arith.addf %105, %109 : vector<1x256xf32>
    %c32 = arith.constant 32 : index
    %c0_64 = arith.constant 0 : index
    %111 = vector.load %arg5[%c32, %c0_64] : memref<64x256xf32, #tpu.memory_space<vmem>>, vector<1x256xf32>
    tpu.vector_store %arg5[%c32, %c0_64], %110 {strides = array<i32>} : memref<64x256xf32, #tpu.memory_space<vmem>>, vector<1x256xf32>,
    %c20 = arith.constant 20 : index
    %112 = memref.load %arg0[%c20] : memref<32xi32, #tpu.memory_space<smem>>
    %c28 = arith.constant 28 : index
    %113 = memref.load %arg0[%c28] : memref<32xi32, #tpu.memory_space<smem>>
    %114 = arith.index_cast %112 : i32 to index
    %c0_65 = arith.constant 0 : index
    %c0_66 = arith.constant 0 : index
    %115 = vector.load %arg1[%114, %c0_65, %c0_66] : memref<40x1x256xf32, #tpu.memory_space<vmem>>, vector<1x1x256xf32>
    %116 = vector.shape_cast %115 : vector<1x1x256xf32> to vector<1x256xf32>
    %117 = arith.addf %0, %116 : vector<1x256xf32>
    %c20_i32_67 = arith.constant 20 : i32
    %118 = arith.addi %c20_i32_67, %113 : i32
    %119 = arith.index_cast %118 : i32 to index
    %c0_68 = arith.constant 0 : index
    %c0_69 = arith.constant 0 : index
    %120 = vector.load %arg1[%119, %c0_68, %c0_69] : memref<40x1x256xf32, #tpu.memory_space<vmem>>, vector<1x1x256xf32>
    %121 = vector.shape_cast %120 : vector<1x1x256xf32> to vector<1x256xf32>
    %122 = arith.addf %117, %121 : vector<1x256xf32>
    %c33 = arith.constant 33 : index
    %c0_70 = arith.constant 0 : index
    %123 = vector.load %arg5[%c33, %c0_70] : memref<64x256xf32, #tpu.memory_space<vmem>>, vector<1x256xf32>
    tpu.vector_store %arg5[%c33, %c0_70], %122 {strides = array<i32>} : memref<64x256xf32, #tpu.memory_space<vmem>>, vector<1x256xf32>,
    %c5 = arith.constant 5 : index
    %124 = memref.load %arg0[%c5] : memref<32xi32, #tpu.memory_space<smem>>
    %c13 = arith.constant 13 : index
    %125 = memref.load %arg0[%c13] : memref<32xi32, #tpu.memory_space<smem>>
    %126 = arith.index_cast %124 : i32 to index
    %c0_71 = arith.constant 0 : index
    %c0_72 = arith.constant 0 : index
    %127 = vector.load %arg1[%126, %c0_71, %c0_72] : memref<40x1x256xf32, #tpu.memory_space<vmem>>, vector<1x1x256xf32>
    %128 = vector.shape_cast %127 : vector<1x1x256xf32> to vector<1x256xf32>
    %129 = arith.addf %0, %128 : vector<1x256xf32>
    %c20_i32_73 = arith.constant 20 : i32
    %130 = arith.addi %c20_i32_73, %125 : i32
    %131 = arith.index_cast %130 : i32 to index
    %c0_74 = arith.constant 0 : index
    %c0_75 = arith.constant 0 : index
    %132 = vector.load %arg1[%131, %c0_74, %c0_75] : memref<40x1x256xf32, #tpu.memory_space<vmem>>, vector<1x1x256xf32>
    %133 = vector.shape_cast %132 : vector<1x1x256xf32> to vector<1x256xf32>
    %134 = arith.addf %129, %133 : vector<1x256xf32>
    %c40 = arith.constant 40 : index
    %c0_76 = arith.constant 0 : index
    %135 = vector.load %arg5[%c40, %c0_76] : memref<64x256xf32, #tpu.memory_space<vmem>>, vector<1x256xf32>
    tpu.vector_store %arg5[%c40, %c0_76], %134 {strides = array<i32>} : memref<64x256xf32, #tpu.memory_space<vmem>>, vector<1x256xf32>,
    %c21 = arith.constant 21 : index
    %136 = memref.load %arg0[%c21] : memref<32xi32, #tpu.memory_space<smem>>
    %c29 = arith.constant 29 : index
    %137 = memref.load %arg0[%c29] : memref<32xi32, #tpu.memory_space<smem>>
    %138 = arith.index_cast %136 : i32 to index
    %c0_77 = arith.constant 0 : index
    %c0_78 = arith.constant 0 : index
    %139 = vector.load %arg1[%138, %c0_77, %c0_78] : memref<40x1x256xf32, #tpu.memory_space<vmem>>, vector<1x1x256xf32>
    %140 = vector.shape_cast %139 : vector<1x1x256xf32> to vector<1x256xf32>
    %141 = arith.addf %0, %140 : vector<1x256xf32>
    %c20_i32_79 = arith.constant 20 : i32
    %142 = arith.addi %c20_i32_79, %137 : i32
    %143 = arith.index_cast %142 : i32 to index
    %c0_80 = arith.constant 0 : index
    %c0_81 = arith.constant 0 : index
    %144 = vector.load %arg1[%143, %c0_80, %c0_81] : memref<40x1x256xf32, #tpu.memory_space<vmem>>, vector<1x1x256xf32>
    %145 = vector.shape_cast %144 : vector<1x1x256xf32> to vector<1x256xf32>
    %146 = arith.addf %141, %145 : vector<1x256xf32>
    %c41 = arith.constant 41 : index
    %c0_82 = arith.constant 0 : index
    %147 = vector.load %arg5[%c41, %c0_82] : memref<64x256xf32, #tpu.memory_space<vmem>>, vector<1x256xf32>
    tpu.vector_store %arg5[%c41, %c0_82], %146 {strides = array<i32>} : memref<64x256xf32, #tpu.memory_space<vmem>>, vector<1x256xf32>,
    %c6 = arith.constant 6 : index
    %148 = memref.load %arg0[%c6] : memref<32xi32, #tpu.memory_space<smem>>
    %c14 = arith.constant 14 : index
    %149 = memref.load %arg0[%c14] : memref<32xi32, #tpu.memory_space<smem>>
    %150 = arith.index_cast %148 : i32 to index
    %c0_83 = arith.constant 0 : index
    %c0_84 = arith.constant 0 : index
    %151 = vector.load %arg1[%150, %c0_83, %c0_84] : memref<40x1x256xf32, #tpu.memory_space<vmem>>, vector<1x1x256xf32>
    %152 = vector.shape_cast %151 : vector<1x1x256xf32> to vector<1x256xf32>
    %153 = arith.addf %0, %152 : vector<1x256xf32>
    %c20_i32_85 = arith.constant 20 : i32
    %154 = arith.addi %c20_i32_85, %149 : i32
    %155 = arith.index_cast %154 : i32 to index
    %c0_86 = arith.constant 0 : index
    %c0_87 = arith.constant 0 : index
    %156 = vector.load %arg1[%155, %c0_86, %c0_87] : memref<40x1x256xf32, #tpu.memory_space<vmem>>, vector<1x1x256xf32>
    %157 = vector.shape_cast %156 : vector<1x1x256xf32> to vector<1x256xf32>
    %158 = arith.addf %153, %157 : vector<1x256xf32>
    %c48 = arith.constant 48 : index
    %c0_88 = arith.constant 0 : index
    %159 = vector.load %arg5[%c48, %c0_88] : memref<64x256xf32, #tpu.memory_space<vmem>>, vector<1x256xf32>
    tpu.vector_store %arg5[%c48, %c0_88], %158 {strides = array<i32>} : memref<64x256xf32, #tpu.memory_space<vmem>>, vector<1x256xf32>,
    %c22 = arith.constant 22 : index
    %160 = memref.load %arg0[%c22] : memref<32xi32, #tpu.memory_space<smem>>
    %c30 = arith.constant 30 : index
    %161 = memref.load %arg0[%c30] : memref<32xi32, #tpu.memory_space<smem>>
    %162 = arith.index_cast %160 : i32 to index
    %c0_89 = arith.constant 0 : index
    %c0_90 = arith.constant 0 : index
    %163 = vector.load %arg1[%162, %c0_89, %c0_90] : memref<40x1x256xf32, #tpu.memory_space<vmem>>, vector<1x1x256xf32>
    %164 = vector.shape_cast %163 : vector<1x1x256xf32> to vector<1x256xf32>
    %165 = arith.addf %0, %164 : vector<1x256xf32>
    %c20_i32_91 = arith.constant 20 : i32
    %166 = arith.addi %c20_i32_91, %161 : i32
    %167 = arith.index_cast %166 : i32 to index
    %c0_92 = arith.constant 0 : index
    %c0_93 = arith.constant 0 : index
    %168 = vector.load %arg1[%167, %c0_92, %c0_93] : memref<40x1x256xf32, #tpu.memory_space<vmem>>, vector<1x1x256xf32>
    %169 = vector.shape_cast %168 : vector<1x1x256xf32> to vector<1x256xf32>
    %170 = arith.addf %165, %169 : vector<1x256xf32>
    %c49 = arith.constant 49 : index
    %c0_94 = arith.constant 0 : index
    %171 = vector.load %arg5[%c49, %c0_94] : memref<64x256xf32, #tpu.memory_space<vmem>>, vector<1x256xf32>
    tpu.vector_store %arg5[%c49, %c0_94], %170 {strides = array<i32>} : memref<64x256xf32, #tpu.memory_space<vmem>>, vector<1x256xf32>,
    %c7 = arith.constant 7 : index
    %172 = memref.load %arg0[%c7] : memref<32xi32, #tpu.memory_space<smem>>
    %c15 = arith.constant 15 : index
    %173 = memref.load %arg0[%c15] : memref<32xi32, #tpu.memory_space<smem>>
    %174 = arith.index_cast %172 : i32 to index
    %c0_95 = arith.constant 0 : index
    %c0_96 = arith.constant 0 : index
    %175 = vector.load %arg1[%174, %c0_95, %c0_96] : memref<40x1x256xf32, #tpu.memory_space<vmem>>, vector<1x1x256xf32>
    %176 = vector.shape_cast %175 : vector<1x1x256xf32> to vector<1x256xf32>
    %177 = arith.addf %0, %176 : vector<1x256xf32>
    %c20_i32_97 = arith.constant 20 : i32
    %178 = arith.addi %c20_i32_97, %173 : i32
    %179 = arith.index_cast %178 : i32 to index
    %c0_98 = arith.constant 0 : index
    %c0_99 = arith.constant 0 : index
    %180 = vector.load %arg1[%179, %c0_98, %c0_99] : memref<40x1x256xf32, #tpu.memory_space<vmem>>, vector<1x1x256xf32>
    %181 = vector.shape_cast %180 : vector<1x1x256xf32> to vector<1x256xf32>
    %182 = arith.addf %177, %181 : vector<1x256xf32>
    %c56 = arith.constant 56 : index
    %c0_100 = arith.constant 0 : index
    %183 = vector.load %arg5[%c56, %c0_100] : memref<64x256xf32, #tpu.memory_space<vmem>>, vector<1x256xf32>
    tpu.vector_store %arg5[%c56, %c0_100], %182 {strides = array<i32>} : memref<64x256xf32, #tpu.memory_space<vmem>>, vector<1x256xf32>,
    %c23 = arith.constant 23 : index
    %184 = memref.load %arg0[%c23] : memref<32xi32, #tpu.memory_space<smem>>
    %c31 = arith.constant 31 : index
    %185 = memref.load %arg0[%c31] : memref<32xi32, #tpu.memory_space<smem>>
    %186 = arith.index_cast %184 : i32 to index
    %c0_101 = arith.constant 0 : index
    %c0_102 = arith.constant 0 : index
    %187 = vector.load %arg1[%186, %c0_101, %c0_102] : memref<40x1x256xf32, #tpu.memory_space<vmem>>, vector<1x1x256xf32>
    %188 = vector.shape_cast %187 : vector<1x1x256xf32> to vector<1x256xf32>
    %189 = arith.addf %0, %188 : vector<1x256xf32>
    %c20_i32_103 = arith.constant 20 : i32
    %190 = arith.addi %c20_i32_103, %185 : i32
    %191 = arith.index_cast %190 : i32 to index
    %c0_104 = arith.constant 0 : index
    %c0_105 = arith.constant 0 : index
    %192 = vector.load %arg1[%191, %c0_104, %c0_105] : memref<40x1x256xf32, #tpu.memory_space<vmem>>, vector<1x1x256xf32>
    %193 = vector.shape_cast %192 : vector<1x1x256xf32> to vector<1x256xf32>
    %194 = arith.addf %189, %193 : vector<1x256xf32>
    %c57 = arith.constant 57 : index
    %c0_106 = arith.constant 0 : index
    %195 = vector.load %arg5[%c57, %c0_106] : memref<64x256xf32, #tpu.memory_space<vmem>>, vector<1x256xf32>
    tpu.vector_store %arg5[%c57, %c0_106], %194 {strides = array<i32>} : memref<64x256xf32, #tpu.memory_space<vmem>>, vector<1x256xf32>,
    %c0_107 = arith.constant 0 : index
    %c0_108 = arith.constant 0 : index
    %196 = vector.load %arg2[%c0_107, %c0_108] : memref<64x256xf32, #tpu.memory_space<vmem>>, vector<64x256xf32>
    %cst = arith.constant 0.000000e+00 : f32
    %197 = vector.broadcast %cst : f32 to vector<8x64xf32>
    %cst_109 = arith.constant 0.000000e+00 : f32
    %198 = vector.broadcast %cst_109 : f32 to vector<8x64xf32>
    %c0_110 = arith.constant 0 : index
    %c0_111 = arith.constant 0 : index
    %199 = vector.load %arg5[%c0_110, %c0_111] : memref<64x256xf32, #tpu.memory_space<vmem>>, vector<8x256xf32>
    %cst_112 = arith.constant dense<0.000000e+00> : vector<8x256xf32>
    %200 = tpu.matmul %197, %196, %cst_112 {dimension_numbers = #tpu.dot_dimension_numbers<[1], [0], [0], [1], [0, 0, 1, 1], [], []>} : vector<8x64xf32>, vector<64x256xf32>, vector<8x256xf32> -> vector<8x256xf32>
    %201 = arith.addf %199, %200 : vector<8x256xf32>
    %202 = vector.extract_strided_slice %201 {offsets = [0, 0], sizes = [8, 192], strides = [1, 1]} : vector<8x256xf32> to vector<8x192xf32>
    %203 = arith.negf %202 : vector<8x192xf32>
    %204 = math.exp %203 : vector<8x192xf32>
    %cst_113 = arith.constant 1.000000e+00 : f32
    %205 = vector.broadcast %cst_113 : f32 to vector<8x192xf32>
    %206 = arith.addf %205, %204 : vector<8x192xf32>
    %207 = arith.divf %205, %206 : vector<8x192xf32>
    %208 = vector.extract_strided_slice %207 {offsets = [0, 0], sizes = [8, 64], strides = [1, 1]} : vector<8x192xf32> to vector<8x64xf32>
    %209 = vector.extract_strided_slice %207 {offsets = [0, 64], sizes = [8, 64], strides = [1, 1]} : vector<8x192xf32> to vector<8x64xf32>
    %210 = vector.extract_strided_slice %207 {offsets = [0, 128], sizes = [8, 64], strides = [1, 1]} : vector<8x192xf32> to vector<8x64xf32>
    %211 = vector.extract_strided_slice %201 {offsets = [0, 192], sizes = [8, 64], strides = [1, 1]} : vector<8x256xf32> to vector<8x64xf32>
    %212 = math.tanh %211 : vector<8x64xf32>
    %213 = arith.mulf %209, %198 : vector<8x64xf32>
    %214 = arith.mulf %208, %212 : vector<8x64xf32>
    %215 = arith.addf %213, %214 : vector<8x64xf32>
    %216 = math.tanh %215 : vector<8x64xf32>
    %217 = arith.mulf %210, %216 : vector<8x64xf32>
    %c8_114 = arith.constant 8 : index
    %c0_115 = arith.constant 0 : index
    %218 = vector.load %arg5[%c8_114, %c0_115] : memref<64x256xf32, #tpu.memory_space<vmem>>, vector<8x256xf32>
    %cst_116 = arith.constant dense<0.000000e+00> : vector<8x256xf32>
    %219 = tpu.matmul %217, %196, %cst_116 {dimension_numbers = #tpu.dot_dimension_numbers<[1], [0], [0], [1], [0, 0, 1, 1], [], []>} : vector<8x64xf32>, vector<64x256xf32>, vector<8x256xf32> -> vector<8x256xf32>
    %220 = arith.addf %218, %219 : vector<8x256xf32>
    %221 = vector.extract_strided_slice %220 {offsets = [0, 0], sizes = [8, 192], strides = [1, 1]} : vector<8x256xf32> to vector<8x192xf32>
    %222 = arith.negf %221 : vector<8x192xf32>
    %223 = math.exp %222 : vector<8x192xf32>
    %cst_117 = arith.constant 1.000000e+00 : f32
    %224 = vector.broadcast %cst_117 : f32 to vector<8x192xf32>
    %225 = arith.addf %224, %223 : vector<8x192xf32>
    %226 = arith.divf %224, %225 : vector<8x192xf32>
    %227 = vector.extract_strided_slice %226 {offsets = [0, 0], sizes = [8, 64], strides = [1, 1]} : vector<8x192xf32> to vector<8x64xf32>
    %228 = vector.extract_strided_slice %226 {offsets = [0, 64], sizes = [8, 64], strides = [1, 1]} : vector<8x192xf32> to vector<8x64xf32>
    %229 = vector.extract_strided_slice %226 {offsets = [0, 128], sizes = [8, 64], strides = [1, 1]} : vector<8x192xf32> to vector<8x64xf32>
    %230 = vector.extract_strided_slice %220 {offsets = [0, 192], sizes = [8, 64], strides = [1, 1]} : vector<8x256xf32> to vector<8x64xf32>
    %231 = math.tanh %230 : vector<8x64xf32>
    %232 = arith.mulf %228, %215 : vector<8x64xf32>
    %233 = arith.mulf %227, %231 : vector<8x64xf32>
    %234 = arith.addf %232, %233 : vector<8x64xf32>
    %235 = math.tanh %234 : vector<8x64xf32>
    %236 = arith.mulf %229, %235 : vector<8x64xf32>
    %c16_118 = arith.constant 16 : index
    %c0_119 = arith.constant 0 : index
    %237 = vector.load %arg5[%c16_118, %c0_119] : memref<64x256xf32, #tpu.memory_space<vmem>>, vector<8x256xf32>
    %cst_120 = arith.constant dense<0.000000e+00> : vector<8x256xf32>
    %238 = tpu.matmul %236, %196, %cst_120 {dimension_numbers = #tpu.dot_dimension_numbers<[1], [0], [0], [1], [0, 0, 1, 1], [], []>} : vector<8x64xf32>, vector<64x256xf32>, vector<8x256xf32> -> vector<8x256xf32>
    %239 = arith.addf %237, %238 : vector<8x256xf32>
    %240 = vector.extract_strided_slice %239 {offsets = [0, 0], sizes = [8, 192], strides = [1, 1]} : vector<8x256xf32> to vector<8x192xf32>
    %241 = arith.negf %240 : vector<8x192xf32>
    %242 = math.exp %241 : vector<8x192xf32>
    %cst_121 = arith.constant 1.000000e+00 : f32
    %243 = vector.broadcast %cst_121 : f32 to vector<8x192xf32>
    %244 = arith.addf %243, %242 : vector<8x192xf32>
    %245 = arith.divf %243, %244 : vector<8x192xf32>
    %246 = vector.extract_strided_slice %245 {offsets = [0, 0], sizes = [8, 64], strides = [1, 1]} : vector<8x192xf32> to vector<8x64xf32>
    %247 = vector.extract_strided_slice %245 {offsets = [0, 64], sizes = [8, 64], strides = [1, 1]} : vector<8x192xf32> to vector<8x64xf32>
    %248 = vector.extract_strided_slice %245 {offsets = [0, 128], sizes = [8, 64], strides = [1, 1]} : vector<8x192xf32> to vector<8x64xf32>
    %249 = vector.extract_strided_slice %239 {offsets = [0, 192], sizes = [8, 64], strides = [1, 1]} : vector<8x256xf32> to vector<8x64xf32>
    %250 = math.tanh %249 : vector<8x64xf32>
    %251 = arith.mulf %247, %234 : vector<8x64xf32>
    %252 = arith.mulf %246, %250 : vector<8x64xf32>
    %253 = arith.addf %251, %252 : vector<8x64xf32>
    %254 = math.tanh %253 : vector<8x64xf32>
    %255 = arith.mulf %248, %254 : vector<8x64xf32>
    %c24_122 = arith.constant 24 : index
    %c0_123 = arith.constant 0 : index
    %256 = vector.load %arg5[%c24_122, %c0_123] : memref<64x256xf32, #tpu.memory_space<vmem>>, vector<8x256xf32>
    %cst_124 = arith.constant dense<0.000000e+00> : vector<8x256xf32>
    %257 = tpu.matmul %255, %196, %cst_124 {dimension_numbers = #tpu.dot_dimension_numbers<[1], [0], [0], [1], [0, 0, 1, 1], [], []>} : vector<8x64xf32>, vector<64x256xf32>, vector<8x256xf32> -> vector<8x256xf32>
    %258 = arith.addf %256, %257 : vector<8x256xf32>
    %259 = vector.extract_strided_slice %258 {offsets = [0, 0], sizes = [8, 192], strides = [1, 1]} : vector<8x256xf32> to vector<8x192xf32>
    %260 = arith.negf %259 : vector<8x192xf32>
    %261 = math.exp %260 : vector<8x192xf32>
    %cst_125 = arith.constant 1.000000e+00 : f32
    %262 = vector.broadcast %cst_125 : f32 to vector<8x192xf32>
    %263 = arith.addf %262, %261 : vector<8x192xf32>
    %264 = arith.divf %262, %263 : vector<8x192xf32>
    %265 = vector.extract_strided_slice %264 {offsets = [0, 0], sizes = [8, 64], strides = [1, 1]} : vector<8x192xf32> to vector<8x64xf32>
    %266 = vector.extract_strided_slice %264 {offsets = [0, 64], sizes = [8, 64], strides = [1, 1]} : vector<8x192xf32> to vector<8x64xf32>
    %267 = vector.extract_strided_slice %264 {offsets = [0, 128], sizes = [8, 64], strides = [1, 1]} : vector<8x192xf32> to vector<8x64xf32>
    %268 = vector.extract_strided_slice %258 {offsets = [0, 192], sizes = [8, 64], strides = [1, 1]} : vector<8x256xf32> to vector<8x64xf32>
    %269 = math.tanh %268 : vector<8x64xf32>
    %270 = arith.mulf %266, %253 : vector<8x64xf32>
    %271 = arith.mulf %265, %269 : vector<8x64xf32>
    %272 = arith.addf %270, %271 : vector<8x64xf32>
    %273 = math.tanh %272 : vector<8x64xf32>
    %274 = arith.mulf %267, %273 : vector<8x64xf32>
    %c32_126 = arith.constant 32 : index
    %c0_127 = arith.constant 0 : index
    %275 = vector.load %arg5[%c32_126, %c0_127] : memref<64x256xf32, #tpu.memory_space<vmem>>, vector<8x256xf32>
    %cst_128 = arith.constant dense<0.000000e+00> : vector<8x256xf32>
    %276 = tpu.matmul %274, %196, %cst_128 {dimension_numbers = #tpu.dot_dimension_numbers<[1], [0], [0], [1], [0, 0, 1, 1], [], []>} : vector<8x64xf32>, vector<64x256xf32>, vector<8x256xf32> -> vector<8x256xf32>
    %277 = arith.addf %275, %276 : vector<8x256xf32>
    %278 = vector.extract_strided_slice %277 {offsets = [0, 0], sizes = [8, 192], strides = [1, 1]} : vector<8x256xf32> to vector<8x192xf32>
    %279 = arith.negf %278 : vector<8x192xf32>
    %280 = math.exp %279 : vector<8x192xf32>
    %cst_129 = arith.constant 1.000000e+00 : f32
    %281 = vector.broadcast %cst_129 : f32 to vector<8x192xf32>
    %282 = arith.addf %281, %280 : vector<8x192xf32>
    %283 = arith.divf %281, %282 : vector<8x192xf32>
    %284 = vector.extract_strided_slice %283 {offsets = [0, 0], sizes = [8, 64], strides = [1, 1]} : vector<8x192xf32> to vector<8x64xf32>
    %285 = vector.extract_strided_slice %283 {offsets = [0, 64], sizes = [8, 64], strides = [1, 1]} : vector<8x192xf32> to vector<8x64xf32>
    %286 = vector.extract_strided_slice %283 {offsets = [0, 128], sizes = [8, 64], strides = [1, 1]} : vector<8x192xf32> to vector<8x64xf32>
    %287 = vector.extract_strided_slice %277 {offsets = [0, 192], sizes = [8, 64], strides = [1, 1]} : vector<8x256xf32> to vector<8x64xf32>
    %288 = math.tanh %287 : vector<8x64xf32>
    %289 = arith.mulf %285, %272 : vector<8x64xf32>
    %290 = arith.mulf %284, %288 : vector<8x64xf32>
    %291 = arith.addf %289, %290 : vector<8x64xf32>
    %292 = math.tanh %291 : vector<8x64xf32>
    %293 = arith.mulf %286, %292 : vector<8x64xf32>
    %c40_130 = arith.constant 40 : index
    %c0_131 = arith.constant 0 : index
    %294 = vector.load %arg5[%c40_130, %c0_131] : memref<64x256xf32, #tpu.memory_space<vmem>>, vector<8x256xf32>
    %cst_132 = arith.constant dense<0.000000e+00> : vector<8x256xf32>
    %295 = tpu.matmul %293, %196, %cst_132 {dimension_numbers = #tpu.dot_dimension_numbers<[1], [0], [0], [1], [0, 0, 1, 1], [], []>} : vector<8x64xf32>, vector<64x256xf32>, vector<8x256xf32> -> vector<8x256xf32>
    %296 = arith.addf %294, %295 : vector<8x256xf32>
    %297 = vector.extract_strided_slice %296 {offsets = [0, 0], sizes = [8, 192], strides = [1, 1]} : vector<8x256xf32> to vector<8x192xf32>
    %298 = arith.negf %297 : vector<8x192xf32>
    %299 = math.exp %298 : vector<8x192xf32>
    %cst_133 = arith.constant 1.000000e+00 : f32
    %300 = vector.broadcast %cst_133 : f32 to vector<8x192xf32>
    %301 = arith.addf %300, %299 : vector<8x192xf32>
    %302 = arith.divf %300, %301 : vector<8x192xf32>
    %303 = vector.extract_strided_slice %302 {offsets = [0, 0], sizes = [8, 64], strides = [1, 1]} : vector<8x192xf32> to vector<8x64xf32>
    %304 = vector.extract_strided_slice %302 {offsets = [0, 64], sizes = [8, 64], strides = [1, 1]} : vector<8x192xf32> to vector<8x64xf32>
    %305 = vector.extract_strided_slice %302 {offsets = [0, 128], sizes = [8, 64], strides = [1, 1]} : vector<8x192xf32> to vector<8x64xf32>
    %306 = vector.extract_strided_slice %296 {offsets = [0, 192], sizes = [8, 64], strides = [1, 1]} : vector<8x256xf32> to vector<8x64xf32>
    %307 = math.tanh %306 : vector<8x64xf32>
    %308 = arith.mulf %304, %291 : vector<8x64xf32>
    %309 = arith.mulf %303, %307 : vector<8x64xf32>
    %310 = arith.addf %308, %309 : vector<8x64xf32>
    %311 = math.tanh %310 : vector<8x64xf32>
    %312 = arith.mulf %305, %311 : vector<8x64xf32>
    %c48_134 = arith.constant 48 : index
    %c0_135 = arith.constant 0 : index
    %313 = vector.load %arg5[%c48_134, %c0_135] : memref<64x256xf32, #tpu.memory_space<vmem>>, vector<8x256xf32>
    %cst_136 = arith.constant dense<0.000000e+00> : vector<8x256xf32>
    %314 = tpu.matmul %312, %196, %cst_136 {dimension_numbers = #tpu.dot_dimension_numbers<[1], [0], [0], [1], [0, 0, 1, 1], [], []>} : vector<8x64xf32>, vector<64x256xf32>, vector<8x256xf32> -> vector<8x256xf32>
    %315 = arith.addf %313, %314 : vector<8x256xf32>
    %316 = vector.extract_strided_slice %315 {offsets = [0, 0], sizes = [8, 192], strides = [1, 1]} : vector<8x256xf32> to vector<8x192xf32>
    %317 = arith.negf %316 : vector<8x192xf32>
    %318 = math.exp %317 : vector<8x192xf32>
    %cst_137 = arith.constant 1.000000e+00 : f32
    %319 = vector.broadcast %cst_137 : f32 to vector<8x192xf32>
    %320 = arith.addf %319, %318 : vector<8x192xf32>
    %321 = arith.divf %319, %320 : vector<8x192xf32>
    %322 = vector.extract_strided_slice %321 {offsets = [0, 0], sizes = [8, 64], strides = [1, 1]} : vector<8x192xf32> to vector<8x64xf32>
    %323 = vector.extract_strided_slice %321 {offsets = [0, 64], sizes = [8, 64], strides = [1, 1]} : vector<8x192xf32> to vector<8x64xf32>
    %324 = vector.extract_strided_slice %321 {offsets = [0, 128], sizes = [8, 64], strides = [1, 1]} : vector<8x192xf32> to vector<8x64xf32>
    %325 = vector.extract_strided_slice %315 {offsets = [0, 192], sizes = [8, 64], strides = [1, 1]} : vector<8x256xf32> to vector<8x64xf32>
    %326 = math.tanh %325 : vector<8x64xf32>
    %327 = arith.mulf %323, %310 : vector<8x64xf32>
    %328 = arith.mulf %322, %326 : vector<8x64xf32>
    %329 = arith.addf %327, %328 : vector<8x64xf32>
    %330 = math.tanh %329 : vector<8x64xf32>
    %331 = arith.mulf %324, %330 : vector<8x64xf32>
    %c56_138 = arith.constant 56 : index
    %c0_139 = arith.constant 0 : index
    %332 = vector.load %arg5[%c56_138, %c0_139] : memref<64x256xf32, #tpu.memory_space<vmem>>, vector<8x256xf32>
    %cst_140 = arith.constant dense<0.000000e+00> : vector<8x256xf32>
    %333 = tpu.matmul %331, %196, %cst_140 {dimension_numbers = #tpu.dot_dimension_numbers<[1], [0], [0], [1], [0, 0, 1, 1], [], []>} : vector<8x64xf32>, vector<64x256xf32>, vector<8x256xf32> -> vector<8x256xf32>
    %334 = arith.addf %332, %333 : vector<8x256xf32>
    %335 = vector.extract_strided_slice %334 {offsets = [0, 0], sizes = [8, 192], strides = [1, 1]} : vector<8x256xf32> to vector<8x192xf32>
    %336 = arith.negf %335 : vector<8x192xf32>
    %337 = math.exp %336 : vector<8x192xf32>
    %cst_141 = arith.constant 1.000000e+00 : f32
    %338 = vector.broadcast %cst_141 : f32 to vector<8x192xf32>
    %339 = arith.addf %338, %337 : vector<8x192xf32>
    %340 = arith.divf %338, %339 : vector<8x192xf32>
    %341 = vector.extract_strided_slice %340 {offsets = [0, 0], sizes = [8, 64], strides = [1, 1]} : vector<8x192xf32> to vector<8x64xf32>
    %342 = vector.extract_strided_slice %340 {offsets = [0, 64], sizes = [8, 64], strides = [1, 1]} : vector<8x192xf32> to vector<8x64xf32>
    %343 = vector.extract_strided_slice %340 {offsets = [0, 128], sizes = [8, 64], strides = [1, 1]} : vector<8x192xf32> to vector<8x64xf32>
    %344 = vector.extract_strided_slice %334 {offsets = [0, 192], sizes = [8, 64], strides = [1, 1]} : vector<8x256xf32> to vector<8x64xf32>
    %345 = math.tanh %344 : vector<8x64xf32>
    %346 = arith.mulf %342, %329 : vector<8x64xf32>
    %347 = arith.mulf %341, %345 : vector<8x64xf32>
    %348 = arith.addf %346, %347 : vector<8x64xf32>
    %349 = math.tanh %348 : vector<8x64xf32>
    %350 = arith.mulf %343, %349 : vector<8x64xf32>
    %351 = vector.extract_strided_slice %350 {offsets = [0, 0], sizes = [8, 32], strides = [1, 1]} : vector<8x64xf32> to vector<8x32xf32>
    %352 = vector.extract_strided_slice %350 {offsets = [0, 32], sizes = [8, 32], strides = [1, 1]} : vector<8x64xf32> to vector<8x32xf32>
    %353 = arith.subf %351, %352 : vector<8x32xf32>
    %cst_142 = arith.constant 9.99999997E-7 : f32
    %354 = vector.broadcast %cst_142 : f32 to vector<8x32xf32>
    %355 = arith.addf %353, %354 : vector<8x32xf32>
    %356 = math.absf %355 : vector<8x32xf32>
    %cst_143 = arith.constant dense<0.000000e+00> : vector<8xf32>
    %357 = vector.multi_reduction <add>, %356, %cst_143 [1] : vector<8x32xf32> to vector<8xf32>
    %358 = vector.shape_cast %357 : vector<8xf32> to vector<8x1xf32>
    %cst_144 = arith.constant 0.000000e+00 : f32
    %359 = vector.broadcast %cst_144 : f32 to vector<8x1xf32>
    %360 = arith.subf %359, %358 : vector<8x1xf32>
    %361 = math.exp %360 : vector<8x1xf32>
    %362 = vector.extract_strided_slice %361 {offsets = [0, 0], sizes = [2, 1], strides = [1, 1]} : vector<8x1xf32> to vector<2x1xf32>
    %c0_145 = arith.constant 0 : index
    %c0_146 = arith.constant 0 : index
    %363 = vector.load %arg4[%c0_145, %c0_146] : memref<2x1xf32, #tpu.memory_space<vmem>>, vector<2x1xf32>
    tpu.vector_store %arg4[%c0_145, %c0_146], %362 {strides = array<i32>} : memref<2x1xf32, #tpu.memory_space<vmem>>, vector<2x1xf32>,
    return
  }
}

</mosaic_0001>

<llo_original>
// kernel: malstm_pallas.1
$region0: #{malstm_pallas.1}
  #allocation0 [shape = 'u32[]', space=smem, size = 0x4, offset = 0x4, fixed_abs, tag = 'smem constant byte address 0x4 - core index']
  #allocation1 [shape = 'u32[144,128]{1,0:T(1,128)}', space=vmem, size = 0x12000, scoped, tag = 'internal scratch']
  #allocation2 [shape = 'f32[64,256]{1,0:T(8,128)}', space=vmem, size = 0x10000, scoped, tag = 'scratch operand']
  %s0 = inlined_call_operand.vmem [shape: s32[32], index: 0, kind: input, shape index: {}]
  %s1 = inlined_call_operand.hbm [shape: f32[40,1,256], index: 1, kind: input, shape index: {}]
  %s2 = inlined_call_operand.hbm [shape: f32[64,256], index: 2, kind: input, shape index: {}]
  %s3 = inlined_call_operand.vmem [shape: f32[1,256], index: 3, kind: input, shape index: {}]
  %s4 = inlined_call_operand.vmem [shape: f32[2,1], index: 4, kind: output, shape index: {}]
  %s5 = sld [smem:[#allocation0]]
  $region38: #{malstm_pallas.1} parent=0
    _
  %s7 = ssub.s32 1, %s5
  %s8 = scalar_select 0, %s7, %s5
  $region1: #{malstm_pallas.1} parent=0
    #allocation3 [shape = 'u8[512]{0}', space=smem, size = 0x200, scoped, tag = 'input window, operand 0, single buffered']
    #allocation4 [shape = 's32[1]{0}', space=sflag, size = 0x4, scoped, tag = 'scoped memory for malstm_pallas.1']
    #allocation5 [shape = 's32[1]{0}', space=sflag, size = 0x4, scoped, tag = 'scoped memory for malstm_pallas.1']
    #allocation6 [shape = 'u8[40960]{0}', space=vmem, size = 0xa000, scoped, tag = 'input window, operand 1, single buffered']
    #allocation7 [shape = 'u8[65536]{0}', space=vmem, size = 0x10000, scoped, tag = 'input window, operand 2, single buffered']
    #allocation8 [shape = 's32[1]{0}', space=sflag, size = 0x4, scoped, tag = 'scoped memory for malstm_pallas.1']
    %9 = vsyncpa [#allocation5], 0
    %10 = vsyncpa [#allocation4], 0
    %11 = vsyncpa [#allocation8], 0
    // Predicated region
    $region2: #{malstm_pallas.1} parent=1 // pred_check
      _
    $region3: #{malstm_pallas.1} parent=1 // pred_check_branch
      %13 = sbr.rel (0) target = $region5
    $region4: #{malstm_pallas.1} parent=1 // pred_region
      %s15 = ssub.s32 16, 16
      %16 = vsyncadd [#allocation5], %s15
      %s18 = sshll.u32 %s0, 4
      %s19 = int_to_ptr.vmem [resolvable:$true] %s18
      %21 = dma.vmem_to_smem %s19, 16, [#allocation3], [#allocation5]
    $region5: #{malstm_pallas.1} parent=1 // pred_fallthru
      _
    // Predicated region
    $region6: #{malstm_pallas.1} parent=1 // pred_check
      _
    $region7: #{malstm_pallas.1} parent=1 // pred_check_branch
      %23 = sbr.rel (0) target = $region9
    $region8: #{malstm_pallas.1} parent=1 // pred_region
      %s25 = ssub.s32 1280, 1280
      %26 = vsyncadd [#allocation4], %s25
      %s27 = sshll.u32 [#allocation6], 4
      %s28 = int_to_ptr.vmem [resolvable:$true] %s27
      %33 = dma.hbm_to_vmem [thread:$0]  %s1, 1280, %s28, [#allocation4], 32, 32, 2
    $region9: #{malstm_pallas.1} parent=1 // pred_fallthru
      _
    // Predicated region
    $region10: #{malstm_pallas.1} parent=1 // pred_check
      _
    $region11: #{malstm_pallas.1} parent=1 // pred_check_branch
      %35 = sbr.rel (0) target = $region13
    $region12: #{malstm_pallas.1} parent=1 // pred_region
      %s37 = ssub.s32 2048, 2048
      %38 = vsyncadd [#allocation8], %s37
      %s39 = sshll.u32 [#allocation7], 4
      %s40 = int_to_ptr.vmem [resolvable:$true] %s39
      %45 = dma.hbm_to_vmem [thread:$0]  %s2, 2048, %s40, [#allocation8], 256, 256, 16
    $region13: #{malstm_pallas.1} parent=1 // pred_fallthru
      _
    // Predicated region
    $region14: #{malstm_pallas.1} parent=1 // pred_check
      _
    $region15: #{malstm_pallas.1} parent=1 // pred_check_branch
      %47 = sbr.rel (0) target = $region17
    $region16: #{malstm_pallas.1} parent=1 // pred_region
      _
    $region17: #{malstm_pallas.1} parent=1 // pred_fallthru
      _
    // Predicated region
    $region18: #{malstm_pallas.1} parent=1 // pred_check
      _
    $region19: #{malstm_pallas.1} parent=1 // pred_check_branch
      %49 = sbr.rel (0) target = $region21
    $region20: #{malstm_pallas.1} parent=1 // pred_region
      %50 = dma.done [#allocation5], 16
    $region21: #{malstm_pallas.1} parent=1 // pred_fallthru
      _
    // Predicated region
    $region22: #{malstm_pallas.1} parent=1 // pred_check
      _
    $region23: #{malstm_pallas.1} parent=1 // pred_check_branch
      %52 = sbr.rel (0) target = $region25
    $region24: #{malstm_pallas.1} parent=1 // pred_region
      %53 = dma.done [#allocation4], 1280
    $region25: #{malstm_pallas.1} parent=1 // pred_fallthru
      _
    // Predicated region
    $region26: #{malstm_pallas.1} parent=1 // pred_check
      _
    $region27: #{malstm_pallas.1} parent=1 // pred_check_branch
      %55 = sbr.rel (0) target = $region29
    $region28: #{malstm_pallas.1} parent=1 // pred_region
      %56 = dma.done [#allocation8], 2048
    $region29: #{malstm_pallas.1} parent=1 // pred_fallthru
      _
    %57 = sfence
    %v58 = vld [vmem:[%s3] sm:$0x3]
    %v60 = vlaneseq
    %v61 = vshrl.u32 %v60, 7
    %v62 = vsub.s32 0, %v61
    %v63 = vrot.slane %v58, %v62
    %v64 = vlaneseq
    %v65 = vshrl.u32 %v64, 7
    %v66 = vsub.s32 1, %v65
    %v67 = vrot.slane %v58, %v66
    %70 = vst [vmem:[#allocation2] sm:$0xff] %v63
    %71 = vst [vmem:[#allocation2 + $0x8] sm:$0xff] %v67
    %72 = vst [vmem:[#allocation2 + $0x10] sm:$0xff] %v63
    %73 = vst [vmem:[#allocation2 + $0x18] sm:$0xff] %v67
    %74 = vst [vmem:[#allocation2 + $0x20] sm:$0xff] %v63
    %75 = vst [vmem:[#allocation2 + $0x28] sm:$0xff] %v67
    %76 = vst [vmem:[#allocation2 + $0x30] sm:$0xff] %v63
    %77 = vst [vmem:[#allocation2 + $0x38] sm:$0xff] %v67
    %78 = vst [vmem:[#allocation2 + $0x40] sm:$0xff] %v63
    %79 = vst [vmem:[#allocation2 + $0x48] sm:$0xff] %v67
    %80 = vst [vmem:[#allocation2 + $0x50] sm:$0xff] %v63
    %81 = vst [vmem:[#allocation2 + $0x58] sm:$0xff] %v67
    %82 = vst [vmem:[#allocation2 + $0x60] sm:$0xff] %v63
    %83 = vst [vmem:[#allocation2 + $0x68] sm:$0xff] %v67
    %84 = vst [vmem:[#allocation2 + $0x70] sm:$0xff] %v63
    %85 = vst [vmem:[#allocation2 + $0x78] sm:$0xff] %v67
    %s86 = sld [smem:[#allocation3]]
    %s87 = sld [smem:[#allocation3 + $0x8]]
    %s88 = smul.u32 %s86, 2
    %s89 = scalar_lea.vmem [#allocation6], %s88
    %v90 = vld [vmem:[%s89] sm:$0x3]
    %v91 = vadd.f32 %v58, %v90
    %s92 = sadd.s32 %s87, 20
    %s93 = smul.u32 %s92, 2
    %s94 = scalar_lea.vmem [#allocation6], %s93
    %v95 = vld [vmem:[%s94] sm:$0x3]
    %v96 = vadd.f32 %v91, %v95
    %v97 = vlaneseq
    %vm98 = vcmp.ge.s32.totalorder %v97, 0
    %vm99 = vcmp.lt.s32.totalorder %v97, 256
    %vm100 = vmand %vm98, %vm99
    %101 = vst.msk [vmem:[#allocation2] ss:$8 sm:$0x3] %vm100, %v96
    %102 = vst.msk [vmem:[#allocation2] ss:$8 sm:$0x0] %vm100, %v96
    %s103 = sld [smem:[#allocation3 + $0x10]]
    %s104 = sld [smem:[#allocation3 + $0x18]]
    %s105 = smul.u32 %s103, 2
    %s106 = scalar_lea.vmem [#allocation6], %s105
    %v107 = vld [vmem:[%s106] sm:$0x3]
    %v108 = vadd.f32 %v58, %v107
    %s109 = sadd.s32 %s104, 20
    %s110 = smul.u32 %s109, 2
    %s111 = scalar_lea.vmem [#allocation6], %s110
    %v112 = vld [vmem:[%s111] sm:$0x3]
    %v113 = vadd.f32 %v108, %v112
    %s114 = scalar_lea.vmem [#allocation2], 1
    %115 = vst.msk [vmem:[%s114] ss:$8 sm:$0x3] %vm100, %v113
    %116 = vst.msk [vmem:[%s114] ss:$8 sm:$0x0] %vm100, %v113
    %s117 = sld [smem:[#allocation3 + $0x1]]
    %s118 = sld [smem:[#allocation3 + $0x9]]
    %s119 = smul.u32 %s117, 2
    %s120 = scalar_lea.vmem [#allocation6], %s119
    %v121 = vld [vmem:[%s120] sm:$0x3]
    %v122 = vadd.f32 %v58, %v121
    %s123 = sadd.s32 %s118, 20
    %s124 = smul.u32 %s123, 2
    %s125 = scalar_lea.vmem [#allocation6], %s124
    %v126 = vld [vmem:[%s125] sm:$0x3]
    %v127 = vadd.f32 %v122, %v126
    %s128 = scalar_lea.vmem [#allocation2], 16
    %129 = vst.msk [vmem:[%s128] ss:$8 sm:$0x3] %vm100, %v127
    %130 = vst.msk [vmem:[%s128] ss:$8 sm:$0x0] %vm100, %v127
    %s131 = sld [smem:[#allocation3 + $0x11]]
    %s132 = sld [smem:[#allocation3 + $0x19]]
    %s133 = smul.u32 %s131, 2
    %s134 = scalar_lea.vmem [#allocation6], %s133
    %v135 = vld [vmem:[%s134] sm:$0x3]
    %v136 = vadd.f32 %v58, %v135
    %s137 = sadd.s32 %s132, 20
    %s138 = smul.u32 %s137, 2
    %s139 = scalar_lea.vmem [#allocation6], %s138
    %v140 = vld [vmem:[%s139] sm:$0x3]
    %v141 = vadd.f32 %v136, %v140
    %s142 = scalar_lea.vmem [#allocation2], 17
    %143 = vst.msk [vmem:[%s142] ss:$8 sm:$0x3] %vm100, %v141
    %144 = vst.msk [vmem:[%s142] ss:$8 sm:$0x0] %vm100, %v141
    %s145 = sld [smem:[#allocation3 + $0x2]]
    %s146 = sld [smem:[#allocation3 + $0xa]]
    %s147 = smul.u32 %s145, 2
    %s148 = scalar_lea.vmem [#allocation6], %s147
    %v149 = vld [vmem:[%s148] sm:$0x3]
    %v150 = vadd.f32 %v58, %v149
    %s151 = sadd.s32 %s146, 20
    %s152 = smul.u32 %s151, 2
    %s153 = scalar_lea.vmem [#allocation6], %s152
    %v154 = vld [vmem:[%s153] sm:$0x3]
    %v155 = vadd.f32 %v150, %v154
    %s156 = scalar_lea.vmem [#allocation2], 32
    %157 = vst.msk [vmem:[%s156] ss:$8 sm:$0x3] %vm100, %v155
    %158 = vst.msk [vmem:[%s156] ss:$8 sm:$0x0] %vm100, %v155
    %s159 = sld [smem:[#allocation3 + $0x12]]
    %s160 = sld [smem:[#allocation3 + $0x1a]]
    %s161 = smul.u32 %s159, 2
    %s162 = scalar_lea.vmem [#allocation6], %s161
    %v163 = vld [vmem:[%s162] sm:$0x3]
    %v164 = vadd.f32 %v58, %v163
    %s165 = sadd.s32 %s160, 20
    %s166 = smul.u32 %s165, 2
    %s167 = scalar_lea.vmem [#allocation6], %s166
    %v168 = vld [vmem:[%s167] sm:$0x3]
    %v169 = vadd.f32 %v164, %v168
    %s170 = scalar_lea.vmem [#allocation2], 33
    %171 = vst.msk [vmem:[%s170] ss:$8 sm:$0x3] %vm100, %v169
    %172 = vst.msk [vmem:[%s170] ss:$8 sm:$0x0] %vm100, %v169
    %s173 = sld [smem:[#allocation3 + $0x3]]
    %s174 = sld [smem:[#allocation3 + $0xb]]
    %s175 = smul.u32 %s173, 2
    %s176 = scalar_lea.vmem [#allocation6], %s175
    %v177 = vld [vmem:[%s176] sm:$0x3]
    %v178 = vadd.f32 %v58, %v177
    %s179 = sadd.s32 %s174, 20
    %s180 = smul.u32 %s179, 2
    %s181 = scalar_lea.vmem [#allocation6], %s180
    %v182 = vld [vmem:[%s181] sm:$0x3]
    %v183 = vadd.f32 %v178, %v182
    %s184 = scalar_lea.vmem [#allocation2], 48
    %185 = vst.msk [vmem:[%s184] ss:$8 sm:$0x3] %vm100, %v183
    %186 = vst.msk [vmem:[%s184] ss:$8 sm:$0x0] %vm100, %v183
    %s187 = sld [smem:[#allocation3 + $0x13]]
    %s188 = sld [smem:[#allocation3 + $0x1b]]
    %s189 = smul.u32 %s187, 2
    %s190 = scalar_lea.vmem [#allocation6], %s189
    %v191 = vld [vmem:[%s190] sm:$0x3]
    %v192 = vadd.f32 %v58, %v191
    %s193 = sadd.s32 %s188, 20
    %s194 = smul.u32 %s193, 2
    %s195 = scalar_lea.vmem [#allocation6], %s194
    %v196 = vld [vmem:[%s195] sm:$0x3]
    %v197 = vadd.f32 %v192, %v196
    %s198 = scalar_lea.vmem [#allocation2], 49
    %199 = vst.msk [vmem:[%s198] ss:$8 sm:$0x3] %vm100, %v197
    %200 = vst.msk [vmem:[%s198] ss:$8 sm:$0x0] %vm100, %v197
    %s201 = sld [smem:[#allocation3 + $0x4]]
    %s202 = sld [smem:[#allocation3 + $0xc]]
    %s203 = smul.u32 %s201, 2
    %s204 = scalar_lea.vmem [#allocation6], %s203
    %v205 = vld [vmem:[%s204] sm:$0x3]
    %v206 = vadd.f32 %v58, %v205
    %s207 = sadd.s32 %s202, 20
    %s208 = smul.u32 %s207, 2
    %s209 = scalar_lea.vmem [#allocation6], %s208
    %v210 = vld [vmem:[%s209] sm:$0x3]
    %v211 = vadd.f32 %v206, %v210
    %s212 = scalar_lea.vmem [#allocation2], 64
    %213 = vst.msk [vmem:[%s212] ss:$8 sm:$0x3] %vm100, %v211
    %214 = vst.msk [vmem:[%s212] ss:$8 sm:$0x0] %vm100, %v211
    %s215 = sld [smem:[#allocation3 + $0x14]]
    %s216 = sld [smem:[#allocation3 + $0x1c]]
    %s217 = smul.u32 %s215, 2
    %s218 = scalar_lea.vmem [#allocation6], %s217
    %v219 = vld [vmem:[%s218] sm:$0x3]
    %v220 = vadd.f32 %v58, %v219
    %s221 = sadd.s32 %s216, 20
    %s222 = smul.u32 %s221, 2
    %s223 = scalar_lea.vmem [#allocation6], %s222
    %v224 = vld [vmem:[%s223] sm:$0x3]
    %v225 = vadd.f32 %v220, %v224
    %s226 = scalar_lea.vmem [#allocation2], 65
    %227 = vst.msk [vmem:[%s226] ss:$8 sm:$0x3] %vm100, %v225
    %228 = vst.msk [vmem:[%s226] ss:$8 sm:$0x0] %vm100, %v225
    %s229 = sld [smem:[#allocation3 + $0x5]]
    %s230 = sld [smem:[#allocation3 + $0xd]]
    %s231 = smul.u32 %s229, 2
    %s232 = scalar_lea.vmem [#allocation6], %s231
    %v233 = vld [vmem:[%s232] sm:$0x3]
    %v234 = vadd.f32 %v58, %v233
    %s235 = sadd.s32 %s230, 20
    %s236 = smul.u32 %s235, 2
    %s237 = scalar_lea.vmem [#allocation6], %s236
    %v238 = vld [vmem:[%s237] sm:$0x3]
    %v239 = vadd.f32 %v234, %v238
    %s240 = scalar_lea.vmem [#allocation2], 80
    %241 = vst.msk [vmem:[%s240] ss:$8 sm:$0x3] %vm100, %v239
    %242 = vst.msk [vmem:[%s240] ss:$8 sm:$0x0] %vm100, %v239
    %s243 = sld [smem:[#allocation3 + $0x15]]
    %s244 = sld [smem:[#allocation3 + $0x1d]]
    %s245 = smul.u32 %s243, 2
    %s246 = scalar_lea.vmem [#allocation6], %s245
    %v247 = vld [vmem:[%s246] sm:$0x3]
    %v248 = vadd.f32 %v58, %v247
    %s249 = sadd.s32 %s244, 20
    %s250 = smul.u32 %s249, 2
    %s251 = scalar_lea.vmem [#allocation6], %s250
    %v252 = vld [vmem:[%s251] sm:$0x3]
    %v253 = vadd.f32 %v248, %v252
    %s254 = scalar_lea.vmem [#allocation2], 81
    %255 = vst.msk [vmem:[%s254] ss:$8 sm:$0x3] %vm100, %v253
    %256 = vst.msk [vmem:[%s254] ss:$8 sm:$0x0] %vm100, %v253
    %s257 = sld [smem:[#allocation3 + $0x6]]
    %s258 = sld [smem:[#allocation3 + $0xe]]
    %s259 = smul.u32 %s257, 2
    %s260 = scalar_lea.vmem [#allocation6], %s259
    %v261 = vld [vmem:[%s260] sm:$0x3]
    %v262 = vadd.f32 %v58, %v261
    %s263 = sadd.s32 %s258, 20
    %s264 = smul.u32 %s263, 2
    %s265 = scalar_lea.vmem [#allocation6], %s264
    %v266 = vld [vmem:[%s265] sm:$0x3]
    %v267 = vadd.f32 %v262, %v266
    %s268 = scalar_lea.vmem [#allocation2], 96
    %269 = vst.msk [vmem:[%s268] ss:$8 sm:$0x3] %vm100, %v267
    %270 = vst.msk [vmem:[%s268] ss:$8 sm:$0x0] %vm100, %v267
    %s271 = sld [smem:[#allocation3 + $0x16]]
    %s272 = sld [smem:[#allocation3 + $0x1e]]
    %s273 = smul.u32 %s271, 2
    %s274 = scalar_lea.vmem [#allocation6], %s273
    %v275 = vld [vmem:[%s274] sm:$0x3]
    %v276 = vadd.f32 %v58, %v275
    %s277 = sadd.s32 %s272, 20
    %s278 = smul.u32 %s277, 2
    %s279 = scalar_lea.vmem [#allocation6], %s278
    %v280 = vld [vmem:[%s279] sm:$0x3]
    %v281 = vadd.f32 %v276, %v280
    %s282 = scalar_lea.vmem [#allocation2], 97
    %283 = vst.msk [vmem:[%s282] ss:$8 sm:$0x3] %vm100, %v281
    %284 = vst.msk [vmem:[%s282] ss:$8 sm:$0x0] %vm100, %v281
    %s285 = sld [smem:[#allocation3 + $0x7]]
    %s286 = sld [smem:[#allocation3 + $0xf]]
    %s287 = smul.u32 %s285, 2
    %s288 = scalar_lea.vmem [#allocation6], %s287
    %v289 = vld [vmem:[%s288] sm:$0x3]
    %v290 = vadd.f32 %v58, %v289
    %s291 = sadd.s32 %s286, 20
    %s292 = smul.u32 %s291, 2
    %s293 = scalar_lea.vmem [#allocation6], %s292
    %v294 = vld [vmem:[%s293] sm:$0x3]
    %v295 = vadd.f32 %v290, %v294
    %s296 = scalar_lea.vmem [#allocation2], 112
    %297 = vst.msk [vmem:[%s296] ss:$8 sm:$0x3] %vm100, %v295
    %298 = vst.msk [vmem:[%s296] ss:$8 sm:$0x0] %vm100, %v295
    %s299 = sld [smem:[#allocation3 + $0x17]]
    %s300 = sld [smem:[#allocation3 + $0x1f]]
    %s301 = smul.u32 %s299, 2
    %s302 = scalar_lea.vmem [#allocation6], %s301
    %v303 = vld [vmem:[%s302] sm:$0x3]
    %v304 = vadd.f32 %v58, %v303
    %s305 = sadd.s32 %s300, 20
    %s306 = smul.u32 %s305, 2
    %s307 = scalar_lea.vmem [#allocation6], %s306
    %v308 = vld [vmem:[%s307] sm:$0x3]
    %v309 = vadd.f32 %v304, %v308
    %s310 = scalar_lea.vmem [#allocation2], 113
    %311 = vst.msk [vmem:[%s310] ss:$8 sm:$0x3] %vm100, %v309
    %312 = vst.msk [vmem:[%s310] ss:$8 sm:$0x0] %vm100, %v309
    %v313 = vld [vmem:[#allocation7] sm:$0xff]
    %v314 = vld [vmem:[#allocation7 + $0x8] sm:$0xff]
    %v315 = vld [vmem:[#allocation7 + $0x10] sm:$0xff]
    %v316 = vld [vmem:[#allocation7 + $0x18] sm:$0xff]
    %v317 = vld [vmem:[#allocation7 + $0x20] sm:$0xff]
    %v318 = vld [vmem:[#allocation7 + $0x28] sm:$0xff]
    %v319 = vld [vmem:[#allocation7 + $0x30] sm:$0xff]
    %v320 = vld [vmem:[#allocation7 + $0x38] sm:$0xff]
    %v321 = vld [vmem:[#allocation7 + $0x40] sm:$0xff]
    %v322 = vld [vmem:[#allocation7 + $0x48] sm:$0xff]
    %v323 = vld [vmem:[#allocation7 + $0x50] sm:$0xff]
    %v324 = vld [vmem:[#allocation7 + $0x58] sm:$0xff]
    %v325 = vld [vmem:[#allocation7 + $0x60] sm:$0xff]
    %v326 = vld [vmem:[#allocation7 + $0x68] sm:$0xff]
    %v327 = vld [vmem:[#allocation7 + $0x70] sm:$0xff]
    %v328 = vld [vmem:[#allocation7 + $0x78] sm:$0xff]
    %v329 = vld [vmem:[#allocation2] sm:$0xff]
    %v330 = vld [vmem:[#allocation2 + $0x8] sm:$0xff]
    %vm331 = vcmask 523264
    %v333 = vsel %vm331, 0.0, 0
    %335 = vmatprep.subr.mxu0 0.0
    %336 = vmatpush1.msra.mxu0 0.0
    %337 = vmatprep.subr.mxu0 0.0
    %338 = vmatpush1.msra.mxu0 0.0
    %339 = vmatprep.subr.mxu0 0.0
    %340 = vmatpush1.msra.mxu0 0.0
    %341 = vmatprep.subr.mxu0 0.0
    %342 = vmatpush1.msra.mxu0 0.0
    %343 = vmatprep.subr.mxu0 0.0
    %344 = vmatpush1.msra.mxu0 0.0
    %345 = vmatprep.subr.mxu0 0.0
    %346 = vmatpush1.msra.mxu0 0.0
    %347 = vmatprep.subr.mxu0 0.0
    %348 = vmatpush1.msra.mxu0 0.0
    %349 = vmatprep.subr.mxu0 0.0
    %350 = vmatpush1.msra.mxu0 0.0
    %351 = vmatprep.subr.mxu0 %v328
    %352 = vmatpush1.msra.mxu0 %v327
    %353 = vmatprep.subr.mxu0 %v326
    %354 = vmatpush1.msra.mxu0 %v325
    %355 = vmatprep.subr.mxu0 %v324
    %356 = vmatpush1.msra.mxu0 %v323
    %357 = vmatprep.subr.mxu0 %v322
    %358 = vmatpush1.msra.mxu0 %v321
    %359 = vmatprep.subr.mxu0 %v320
    %360 = vmatpush1.msra.mxu0 %v319
    %361 = vmatprep.subr.mxu0 %v318
    %362 = vmatpush1.msra.mxu0 %v317
    %363 = vmatprep.subr.mxu0 %v316
    %364 = vmatpush1.msra.mxu0 %v315
    %365 = vmatprep.subr.mxu0 %v314
    %366 = vmatpush1.msra.mxu0 %v313
    %367 = vmatprep.subr.mxu0 0.0
    %368 = vmatpush2.msra.mxu0 0.0
    %369 = vmatprep.subr.mxu0 0.0
    %370 = vmatpush2.msra.mxu0 0.0
    %371 = vmatprep.subr.mxu0 0.0
    %372 = vmatpush2.msra.mxu0 0.0
    %373 = vmatprep.subr.mxu0 0.0
    %374 = vmatpush2.msra.mxu0 0.0
    %375 = vmatprep.subr.mxu0 0.0
    %376 = vmatpush2.msra.mxu0 0.0
    %377 = vmatprep.subr.mxu0 0.0
    %378 = vmatpush2.msra.mxu0 0.0
    %379 = vmatprep.subr.mxu0 0.0
    %380 = vmatpush2.msra.mxu0 0.0
    %381 = vmatprep.subr.mxu0 0.0
    %382 = vmatpush2.msra.mxu0 0.0
    %383 = vmatprep.subr.mxu0 0.0
    %384 = vmatpush2.msra.mxu0 0.0
    %385 = vmatprep.subr.mxu0 0.0
    %386 = vmatpush2.msra.mxu0 0.0
    %387 = vmatprep.subr.mxu0 0.0
    %388 = vmatpush2.msra.mxu0 0.0
    %389 = vmatprep.subr.mxu0 0.0
    %390 = vmatpush2.msra.mxu0 0.0
    %391 = vmatprep.subr.mxu0 0.0
    %392 = vmatpush2.msra.mxu0 0.0
    %393 = vmatprep.subr.mxu0 0.0
    %394 = vmatpush2.msra.mxu0 0.0
    %395 = vmatprep.subr.mxu0 0.0
    %396 = vmatpush2.msra.mxu0 0.0
    %397 = vmatprep.subr.mxu0 0.0
    %398 = vmatpush2.msra.mxu0 0.0
    %399 = vmatprep.mubr.f32.mxu0 0.0
    %400 = vmatmul.mubr.f32.gmra.mxu0 %v333
    %v401 = vpop.f32.mrf.mxu0
    %v402 = vadd.f32 0.0, %v401
    %v403 = vpop.f32.mrf.mxu0
    %v404 = vadd.f32 0.0, %v403
    %405 = vdwg.mxu0
    %v406 = vadd.f32 %v329, %v402
    %v407 = vadd.f32 %v330, %v404
    %v408 = vxor.u32 %v406, 2147483648
    %v409 = vxor.u32 %v407, 2147483648
    %v410 = vmul.f32 %v408, 1.442695
    %v411 = vpow.pop %v410
    %v412 = vmul.f32 %v409, 1.442695
    %v413 = vpow.pop %v412
    %v414 = vadd.f32 %v411, 1.0
    %v415 = vadd.f32 %v413, 1.0
    %v416 = vrcp.pop %v414
    %v417 = vmul.f32 1.0, %v416
    %v418 = vrcp.pop %v415
    %v419 = vmul.f32 1.0, %v418
    %v420 = vtanh.pop %v407
    %v421 = vmul.f32 %v417, 0.0
    %423 = vrot.lane.b32.xlu0 %v420, 64
    %v424 = vpop.permute.xlu0 %423
    %v426 = vmul.f32 %v417, %v424
    %428 = vrot.lane.b32.xlu0 %v426, 64
    %v429 = vpop.permute.xlu0 %428
    %v431 = vadd.f32 %v421, %v429
    %v432 = vtanh.pop %v431
    %434 = vrot.lane.b32.xlu0 %v432, 64
    %v435 = vpop.permute.xlu0 %434
    %v437 = vmul.f32 %v419, %v435
    %v438 = vld [vmem:[#allocation2 + $0x10] sm:$0xff]
    %v439 = vld [vmem:[#allocation2 + $0x18] sm:$0xff]
    %v441 = vsel %vm331, %v437, 0
    %443 = vmatprep.subr.mxu0 0.0
    %444 = vmatpush1.msra.mxu0 0.0
    %445 = vmatprep.subr.mxu0 0.0
    %446 = vmatpush1.msra.mxu0 0.0
    %447 = vmatprep.subr.mxu0 0.0
    %448 = vmatpush1.msra.mxu0 0.0
    %449 = vmatprep.subr.mxu0 0.0
    %450 = vmatpush1.msra.mxu0 0.0
    %451 = vmatprep.subr.mxu0 0.0
    %452 = vmatpush1.msra.mxu0 0.0
    %453 = vmatprep.subr.mxu0 0.0
    %454 = vmatpush1.msra.mxu0 0.0
    %455 = vmatprep.subr.mxu0 0.0
    %456 = vmatpush1.msra.mxu0 0.0
    %457 = vmatprep.subr.mxu0 0.0
    %458 = vmatpush1.msra.mxu0 0.0
    %459 = vmatprep.subr.mxu0 %v328
    %460 = vmatpush1.msra.mxu0 %v327
    %461 = vmatprep.subr.mxu0 %v326
    %462 = vmatpush1.msra.mxu0 %v325
    %463 = vmatprep.subr.mxu0 %v324
    %464 = vmatpush1.msra.mxu0 %v323
    %465 = vmatprep.subr.mxu0 %v322
    %466 = vmatpush1.msra.mxu0 %v321
    %467 = vmatprep.subr.mxu0 %v320
    %468 = vmatpush1.msra.mxu0 %v319
    %469 = vmatprep.subr.mxu0 %v318
    %470 = vmatpush1.msra.mxu0 %v317
    %471 = vmatprep.subr.mxu0 %v316
    %472 = vmatpush1.msra.mxu0 %v315
    %473 = vmatprep.subr.mxu0 %v314
    %474 = vmatpush1.msra.mxu0 %v313
    %475 = vmatprep.subr.mxu0 0.0
    %476 = vmatpush2.msra.mxu0 0.0
    %477 = vmatprep.subr.mxu0 0.0
    %478 = vmatpush2.msra.mxu0 0.0
    %479 = vmatprep.subr.mxu0 0.0
    %480 = vmatpush2.msra.mxu0 0.0
    %481 = vmatprep.subr.mxu0 0.0
    %482 = vmatpush2.msra.mxu0 0.0
    %483 = vmatprep.subr.mxu0 0.0
    %484 = vmatpush2.msra.mxu0 0.0
    %485 = vmatprep.subr.mxu0 0.0
    %486 = vmatpush2.msra.mxu0 0.0
    %487 = vmatprep.subr.mxu0 0.0
    %488 = vmatpush2.msra.mxu0 0.0
    %489 = vmatprep.subr.mxu0 0.0
    %490 = vmatpush2.msra.mxu0 0.0
    %491 = vmatprep.subr.mxu0 0.0
    %492 = vmatpush2.msra.mxu0 0.0
    %493 = vmatprep.subr.mxu0 0.0
    %494 = vmatpush2.msra.mxu0 0.0
    %495 = vmatprep.subr.mxu0 0.0
    %496 = vmatpush2.msra.mxu0 0.0
    %497 = vmatprep.subr.mxu0 0.0
    %498 = vmatpush2.msra.mxu0 0.0
    %499 = vmatprep.subr.mxu0 0.0
    %500 = vmatpush2.msra.mxu0 0.0
    %501 = vmatprep.subr.mxu0 0.0
    %502 = vmatpush2.msra.mxu0 0.0
    %503 = vmatprep.subr.mxu0 0.0
    %504 = vmatpush2.msra.mxu0 0.0
    %505 = vmatprep.subr.mxu0 0.0
    %506 = vmatpush2.msra.mxu0 0.0
    %507 = vmatprep.mubr.f32.mxu0 0.0
    %508 = vmatmul.mubr.f32.gmra.mxu0 %v441
    %v509 = vpop.f32.mrf.mxu0
    %v510 = vadd.f32 0.0, %v509
    %v511 = vpop.f32.mrf.mxu0
    %v512 = vadd.f32 0.0, %v511
    %513 = vdwg.mxu0
    %v514 = vadd.f32 %v438, %v510
    %v515 = vadd.f32 %v439, %v512
    %v516 = vxor.u32 %v514, 2147483648
    %v517 = vxor.u32 %v515, 2147483648
    %v518 = vmul.f32 %v516, 1.442695
    %v519 = vpow.pop %v518
    %v520 = vmul.f32 %v517, 1.442695
    %v521 = vpow.pop %v520
    %v522 = vadd.f32 %v519, 1.0
    %v523 = vadd.f32 %v521, 1.0
    %v524 = vrcp.pop %v522
    %v525 = vmul.f32 1.0, %v524
    %v526 = vrcp.pop %v523
    %v527 = vmul.f32 1.0, %v526
    %v528 = vtanh.pop %v515
    %v529 = vmul.f32 %v525, %v431
    %531 = vrot.lane.b32.xlu0 %v528, 64
    %v532 = vpop.permute.xlu0 %531
    %v534 = vmul.f32 %v525, %v532
    %536 = vrot.lane.b32.xlu0 %v534, 64
    %v537 = vpop.permute.xlu0 %536
    %v539 = vadd.f32 %v529, %v537
    %v540 = vtanh.pop %v539
    %542 = vrot.lane.b32.xlu0 %v540, 64
    %v543 = vpop.permute.xlu0 %542
    %v545 = vmul.f32 %v527, %v543
    %v546 = vld [vmem:[#allocation2 + $0x20] sm:$0xff]
    %v547 = vld [vmem:[#allocation2 + $0x28] sm:$0xff]
    %v549 = vsel %vm331, %v545, 0
    %551 = vmatprep.subr.mxu0 0.0
    %552 = vmatpush1.msra.mxu0 0.0
    %553 = vmatprep.subr.mxu0 0.0
    %554 = vmatpush1.msra.mxu0 0.0
    %555 = vmatprep.subr.mxu0 0.0
    %556 = vmatpush1.msra.mxu0 0.0
    %557 = vmatprep.subr.mxu0 0.0
    %558 = vmatpush1.msra.mxu0 0.0
    %559 = vmatprep.subr.mxu0 0.0
    %560 = vmatpush1.msra.mxu0 0.0
    %561 = vmatprep.subr.mxu0 0.0
    %562 = vmatpush1.msra.mxu0 0.0
    %563 = vmatprep.subr.mxu0 0.0
    %564 = vmatpush1.msra.mxu0 0.0
    %565 = vmatprep.subr.mxu0 0.0
    %566 = vmatpush1.msra.mxu0 0.0
    %567 = vmatprep.subr.mxu0 %v328
    %568 = vmatpush1.msra.mxu0 %v327
    %569 = vmatprep.subr.mxu0 %v326
    %570 = vmatpush1.msra.mxu0 %v325
    %571 = vmatprep.subr.mxu0 %v324
    %572 = vmatpush1.msra.mxu0 %v323
    %573 = vmatprep.subr.mxu0 %v322
    %574 = vmatpush1.msra.mxu0 %v321
    %575 = vmatprep.subr.mxu0 %v320
    %576 = vmatpush1.msra.mxu0 %v319
    %577 = vmatprep.subr.mxu0 %v318
    %578 = vmatpush1.msra.mxu0 %v317
    %579 = vmatprep.subr.mxu0 %v316
    %580 = vmatpush1.msra.mxu0 %v315
    %581 = vmatprep.subr.mxu0 %v314
    %582 = vmatpush1.msra.mxu0 %v313
    %583 = vmatprep.subr.mxu0 0.0
    %584 = vmatpush2.msra.mxu0 0.0
    %585 = vmatprep.subr.mxu0 0.0
    %586 = vmatpush2.msra.mxu0 0.0
    %587 = vmatprep.subr.mxu0 0.0
    %588 = vmatpush2.msra.mxu0 0.0
    %589 = vmatprep.subr.mxu0 0.0
    %590 = vmatpush2.msra.mxu0 0.0
    %591 = vmatprep.subr.mxu0 0.0
    %592 = vmatpush2.msra.mxu0 0.0
    %593 = vmatprep.subr.mxu0 0.0
    %594 = vmatpush2.msra.mxu0 0.0
    %595 = vmatprep.subr.mxu0 0.0
    %596 = vmatpush2.msra.mxu0 0.0
    %597 = vmatprep.subr.mxu0 0.0
    %598 = vmatpush2.msra.mxu0 0.0
    %599 = vmatprep.subr.mxu0 0.0
    %600 = vmatpush2.msra.mxu0 0.0
    %601 = vmatprep.subr.mxu0 0.0
    %602 = vmatpush2.msra.mxu0 0.0
    %603 = vmatprep.subr.mxu0 0.0
    %604 = vmatpush2.msra.mxu0 0.0
    %605 = vmatprep.subr.mxu0 0.0
    %606 = vmatpush2.msra.mxu0 0.0
    %607 = vmatprep.subr.mxu0 0.0
    %608 = vmatpush2.msra.mxu0 0.0
    %609 = vmatprep.subr.mxu0 0.0
    %610 = vmatpush2.msra.mxu0 0.0
    %611 = vmatprep.subr.mxu0 0.0
    %612 = vmatpush2.msra.mxu0 0.0
    %613 = vmatprep.subr.mxu0 0.0
    %614 = vmatpush2.msra.mxu0 0.0
    %615 = vmatprep.mubr.f32.mxu0 0.0
    %616 = vmatmul.mubr.f32.gmra.mxu0 %v549
    %v617 = vpop.f32.mrf.mxu0
    %v618 = vadd.f32 0.0, %v617
    %v619 = vpop.f32.mrf.mxu0
    %v620 = vadd.f32 0.0, %v619
    %621 = vdwg.mxu0
    %v622 = vadd.f32 %v546, %v618
    %v623 = vadd.f32 %v547, %v620
    %v624 = vxor.u32 %v622, 2147483648
    %v625 = vxor.u32 %v623, 2147483648
    %v626 = vmul.f32 %v624, 1.442695
    %v627 = vpow.pop %v626
    %v628 = vmul.f32 %v625, 1.442695
    %v629 = vpow.pop %v628
    %v630 = vadd.f32 %v627, 1.0
    %v631 = vadd.f32 %v629, 1.0
    %v632 = vrcp.pop %v630
    %v633 = vmul.f32 1.0, %v632
    %v634 = vrcp.pop %v631
    %v635 = vmul.f32 1.0, %v634
    %v636 = vtanh.pop %v623
    %v637 = vmul.f32 %v633, %v539
    %639 = vrot.lane.b32.xlu0 %v636, 64
    %v640 = vpop.permute.xlu0 %639
    %v642 = vmul.f32 %v633, %v640
    %644 = vrot.lane.b32.xlu0 %v642, 64
    %v645 = vpop.permute.xlu0 %644
    %v647 = vadd.f32 %v637, %v645
    %v648 = vtanh.pop %v647
    %650 = vrot.lane.b32.xlu0 %v648, 64
    %v651 = vpop.permute.xlu0 %650
    %v653 = vmul.f32 %v635, %v651
    %v654 = vld [vmem:[#allocation2 + $0x30] sm:$0xff]
    %v655 = vld [vmem:[#allocation2 + $0x38] sm:$0xff]
    %v657 = vsel %vm331, %v653, 0
    %659 = vmatprep.subr.mxu0 0.0
    %660 = vmatpush1.msra.mxu0 0.0
    %661 = vmatprep.subr.mxu0 0.0
    %662 = vmatpush1.msra.mxu0 0.0
    %663 = vmatprep.subr.mxu0 0.0
    %664 = vmatpush1.msra.mxu0 0.0
    %665 = vmatprep.subr.mxu0 0.0
    %666 = vmatpush1.msra.mxu0 0.0
    %667 = vmatprep.subr.mxu0 0.0
    %668 = vmatpush1.msra.mxu0 0.0
    %669 = vmatprep.subr.mxu0 0.0
    %670 = vmatpush1.msra.mxu0 0.0
    %671 = vmatprep.subr.mxu0 0.0
    %672 = vmatpush1.msra.mxu0 0.0
    %673 = vmatprep.subr.mxu0 0.0
    %674 = vmatpush1.msra.mxu0 0.0
    %675 = vmatprep.subr.mxu0 %v328
    %676 = vmatpush1.msra.mxu0 %v327
    %677 = vmatprep.subr.mxu0 %v326
    %678 = vmatpush1.msra.mxu0 %v325
    %679 = vmatprep.subr.mxu0 %v324
    %680 = vmatpush1.msra.mxu0 %v323
    %681 = vmatprep.subr.mxu0 %v322
    %682 = vmatpush1.msra.mxu0 %v321
    %683 = vmatprep.subr.mxu0 %v320
    %684 = vmatpush1.msra.mxu0 %v319
    %685 = vmatprep.subr.mxu0 %v318
    %686 = vmatpush1.msra.mxu0 %v317
    %687 = vmatprep.subr.mxu0 %v316
    %688 = vmatpush1.msra.mxu0 %v315
    %689 = vmatprep.subr.mxu0 %v314
    %690 = vmatpush1.msra.mxu0 %v313
    %691 = vmatprep.subr.mxu0 0.0
    %692 = vmatpush2.msra.mxu0 0.0
    %693 = vmatprep.subr.mxu0 0.0
    %694 = vmatpush2.msra.mxu0 0.0
    %695 = vmatprep.subr.mxu0 0.0
    %696 = vmatpush2.msra.mxu0 0.0
    %697 = vmatprep.subr.mxu0 0.0
    %698 = vmatpush2.msra.mxu0 0.0
    %699 = vmatprep.subr.mxu0 0.0
    %700 = vmatpush2.msra.mxu0 0.0
    %701 = vmatprep.subr.mxu0 0.0
    %702 = vmatpush2.msra.mxu0 0.0
    %703 = vmatprep.subr.mxu0 0.0
    %704 = vmatpush2.msra.mxu0 0.0
    %705 = vmatprep.subr.mxu0 0.0
    %706 = vmatpush2.msra.mxu0 0.0
    %707 = vmatprep.subr.mxu0 0.0
    %708 = vmatpush2.msra.mxu0 0.0
    %709 = vmatprep.subr.mxu0 0.0
    %710 = vmatpush2.msra.mxu0 0.0
    %711 = vmatprep.subr.mxu0 0.0
    %712 = vmatpush2.msra.mxu0 0.0
    %713 = vmatprep.subr.mxu0 0.0
    %714 = vmatpush2.msra.mxu0 0.0
    %715 = vmatprep.subr.mxu0 0.0
    %716 = vmatpush2.msra.mxu0 0.0
    %717 = vmatprep.subr.mxu0 0.0
    %718 = vmatpush2.msra.mxu0 0.0
    %719 = vmatprep.subr.mxu0 0.0
    %720 = vmatpush2.msra.mxu0 0.0
    %721 = vmatprep.subr.mxu0 0.0
    %722 = vmatpush2.msra.mxu0 0.0
    %723 = vmatprep.mubr.f32.mxu0 0.0
    %724 = vmatmul.mubr.f32.gmra.mxu0 %v657
    %v725 = vpop.f32.mrf.mxu0
    %v726 = vadd.f32 0.0, %v725
    %v727 = vpop.f32.mrf.mxu0
    %v728 = vadd.f32 0.0, %v727
    %729 = vdwg.mxu0
    %v730 = vadd.f32 %v654, %v726
    %v731 = vadd.f32 %v655, %v728
    %v732 = vxor.u32 %v730, 2147483648
    %v733 = vxor.u32 %v731, 2147483648
    %v734 = vmul.f32 %v732, 1.442695
    %v735 = vpow.pop %v734
    %v736 = vmul.f32 %v733, 1.442695
    %v737 = vpow.pop %v736
    %v738 = vadd.f32 %v735, 1.0
    %v739 = vadd.f32 %v737, 1.0
    %v740 = vrcp.pop %v738
    %v741 = vmul.f32 1.0, %v740
    %v742 = vrcp.pop %v739
    %v743 = vmul.f32 1.0, %v742
    %v744 = vtanh.pop %v731
    %v745 = vmul.f32 %v741, %v647
    %747 = vrot.lane.b32.xlu0 %v744, 64
    %v748 = vpop.permute.xlu0 %747
    %v750 = vmul.f32 %v741, %v748
    %752 = vrot.lane.b32.xlu0 %v750, 64
    %v753 = vpop.permute.xlu0 %752
    %v755 = vadd.f32 %v745, %v753
    %v756 = vtanh.pop %v755
    %758 = vrot.lane.b32.xlu0 %v756, 64
    %v759 = vpop.permute.xlu0 %758
    %v761 = vmul.f32 %v743, %v759
    %v762 = vld [vmem:[#allocation2 + $0x40] sm:$0xff]
    %v763 = vld [vmem:[#allocation2 + $0x48] sm:$0xff]
    %v765 = vsel %vm331, %v761, 0
    %767 = vmatprep.subr.mxu0 0.0
    %768 = vmatpush1.msra.mxu0 0.0
    %769 = vmatprep.subr.mxu0 0.0
    %770 = vmatpush1.msra.mxu0 0.0
    %771 = vmatprep.subr.mxu0 0.0
    %772 = vmatpush1.msra.mxu0 0.0
    %773 = vmatprep.subr.mxu0 0.0
    %774 = vmatpush1.msra.mxu0 0.0
    %775 = vmatprep.subr.mxu0 0.0
    %776 = vmatpush1.msra.mxu0 0.0
    %777 = vmatprep.subr.mxu0 0.0
    %778 = vmatpush1.msra.mxu0 0.0
    %779 = vmatprep.subr.mxu0 0.0
    %780 = vmatpush1.msra.mxu0 0.0
    %781 = vmatprep.subr.mxu0 0.0
    %782 = vmatpush1.msra.mxu0 0.0
    %783 = vmatprep.subr.mxu0 %v328
    %784 = vmatpush1.msra.mxu0 %v327
    %785 = vmatprep.subr.mxu0 %v326
    %786 = vmatpush1.msra.mxu0 %v325
    %787 = vmatprep.subr.mxu0 %v324
    %788 = vmatpush1.msra.mxu0 %v323
    %789 = vmatprep.subr.mxu0 %v322
    %790 = vmatpush1.msra.mxu0 %v321
    %791 = vmatprep.subr.mxu0 %v320
    %792 = vmatpush1.msra.mxu0 %v319
    %793 = vmatprep.subr.mxu0 %v318
    %794 = vmatpush1.msra.mxu0 %v317
    %795 = vmatprep.subr.mxu0 %v316
    %796 = vmatpush1.msra.mxu0 %v315
    %797 = vmatprep.subr.mxu0 %v314
    %798 = vmatpush1.msra.mxu0 %v313
    %799 = vmatprep.subr.mxu0 0.0
    %800 = vmatpush2.msra.mxu0 0.0
    %801 = vmatprep.subr.mxu0 0.0
    %802 = vmatpush2.msra.mxu0 0.0
    %803 = vmatprep.subr.mxu0 0.0
    %804 = vmatpush2.msra.mxu0 0.0
    %805 = vmatprep.subr.mxu0 0.0
    %806 = vmatpush2.msra.mxu0 0.0
    %807 = vmatprep.subr.mxu0 0.0
    %808 = vmatpush2.msra.mxu0 0.0
    %809 = vmatprep.subr.mxu0 0.0
    %810 = vmatpush2.msra.mxu0 0.0
    %811 = vmatprep.subr.mxu0 0.0
    %812 = vmatpush2.msra.mxu0 0.0
    %813 = vmatprep.subr.mxu0 0.0
    %814 = vmatpush2.msra.mxu0 0.0
    %815 = vmatprep.subr.mxu0 0.0
    %816 = vmatpush2.msra.mxu0 0.0
    %817 = vmatprep.subr.mxu0 0.0
    %818 = vmatpush2.msra.mxu0 0.0
    %819 = vmatprep.subr.mxu0 0.0
    %820 = vmatpush2.msra.mxu0 0.0
    %821 = vmatprep.subr.mxu0 0.0
    %822 = vmatpush2.msra.mxu0 0.0
    %823 = vmatprep.subr.mxu0 0.0
    %824 = vmatpush2.msra.mxu0 0.0
    %825 = vmatprep.subr.mxu0 0.0
    %826 = vmatpush2.msra.mxu0 0.0
    %827 = vmatprep.subr.mxu0 0.0
    %828 = vmatpush2.msra.mxu0 0.0
    %829 = vmatprep.subr.mxu0 0.0
    %830 = vmatpush2.msra.mxu0 0.0
    %831 = vmatprep.mubr.f32.mxu0 0.0
    %832 = vmatmul.mubr.f32.gmra.mxu0 %v765
    %v833 = vpop.f32.mrf.mxu0
    %v834 = vadd.f32 0.0, %v833
    %v835 = vpop.f32.mrf.mxu0
    %v836 = vadd.f32 0.0, %v835
    %837 = vdwg.mxu0
    %v838 = vadd.f32 %v762, %v834
    %v839 = vadd.f32 %v763, %v836
    %v840 = vxor.u32 %v838, 2147483648
    %v841 = vxor.u32 %v839, 2147483648
    %v842 = vmul.f32 %v840, 1.442695
    %v843 = vpow.pop %v842
    %v844 = vmul.f32 %v841, 1.442695
    %v845 = vpow.pop %v844
    %v846 = vadd.f32 %v843, 1.0
    %v847 = vadd.f32 %v845, 1.0
    %v848 = vrcp.pop %v846
    %v849 = vmul.f32 1.0, %v848
    %v850 = vrcp.pop %v847
    %v851 = vmul.f32 1.0, %v850
    %v852 = vtanh.pop %v839
    %v853 = vmul.f32 %v849, %v755
    %855 = vrot.lane.b32.xlu0 %v852, 64
    %v856 = vpop.permute.xlu0 %855
    %v858 = vmul.f32 %v849, %v856
    %860 = vrot.lane.b32.xlu0 %v858, 64
    %v861 = vpop.permute.xlu0 %860
    %v863 = vadd.f32 %v853, %v861
    %v864 = vtanh.pop %v863
    %866 = vrot.lane.b32.xlu0 %v864, 64
    %v867 = vpop.permute.xlu0 %866
    %v869 = vmul.f32 %v851, %v867
    %v870 = vld [vmem:[#allocation2 + $0x50] sm:$0xff]
    %v871 = vld [vmem:[#allocation2 + $0x58] sm:$0xff]
    %v873 = vsel %vm331, %v869, 0
    %875 = vmatprep.subr.mxu0 0.0
    %876 = vmatpush1.msra.mxu0 0.0
    %877 = vmatprep.subr.mxu0 0.0
    %878 = vmatpush1.msra.mxu0 0.0
    %879 = vmatprep.subr.mxu0 0.0
    %880 = vmatpush1.msra.mxu0 0.0
    %881 = vmatprep.subr.mxu0 0.0
    %882 = vmatpush1.msra.mxu0 0.0
    %883 = vmatprep.subr.mxu0 0.0
    %884 = vmatpush1.msra.mxu0 0.0
    %885 = vmatprep.subr.mxu0 0.0
    %886 = vmatpush1.msra.mxu0 0.0
    %887 = vmatprep.subr.mxu0 0.0
    %888 = vmatpush1.msra.mxu0 0.0
    %889 = vmatprep.subr.mxu0 0.0
    %890 = vmatpush1.msra.mxu0 0.0
    %891 = vmatprep.subr.mxu0 %v328
    %892 = vmatpush1.msra.mxu0 %v327
    %893 = vmatprep.subr.mxu0 %v326
    %894 = vmatpush1.msra.mxu0 %v325
    %895 = vmatprep.subr.mxu0 %v324
    %896 = vmatpush1.msra.mxu0 %v323
    %897 = vmatprep.subr.mxu0 %v322
    %898 = vmatpush1.msra.mxu0 %v321
    %899 = vmatprep.subr.mxu0 %v320
    %900 = vmatpush1.msra.mxu0 %v319
    %901 = vmatprep.subr.mxu0 %v318
    %902 = vmatpush1.msra.mxu0 %v317
    %903 = vmatprep.subr.mxu0 %v316
    %904 = vmatpush1.msra.mxu0 %v315
    %905 = vmatprep.subr.mxu0 %v314
    %906 = vmatpush1.msra.mxu0 %v313
    %907 = vmatprep.subr.mxu0 0.0
    %908 = vmatpush2.msra.mxu0 0.0
    %909 = vmatprep.subr.mxu0 0.0
    %910 = vmatpush2.msra.mxu0 0.0
    %911 = vmatprep.subr.mxu0 0.0
    %912 = vmatpush2.msra.mxu0 0.0
    %913 = vmatprep.subr.mxu0 0.0
    %914 = vmatpush2.msra.mxu0 0.0
    %915 = vmatprep.subr.mxu0 0.0
    %916 = vmatpush2.msra.mxu0 0.0
    %917 = vmatprep.subr.mxu0 0.0
    %918 = vmatpush2.msra.mxu0 0.0
    %919 = vmatprep.subr.mxu0 0.0
    %920 = vmatpush2.msra.mxu0 0.0
    %921 = vmatprep.subr.mxu0 0.0
    %922 = vmatpush2.msra.mxu0 0.0
    %923 = vmatprep.subr.mxu0 0.0
    %924 = vmatpush2.msra.mxu0 0.0
    %925 = vmatprep.subr.mxu0 0.0
    %926 = vmatpush2.msra.mxu0 0.0
    %927 = vmatprep.subr.mxu0 0.0
    %928 = vmatpush2.msra.mxu0 0.0
    %929 = vmatprep.subr.mxu0 0.0
    %930 = vmatpush2.msra.mxu0 0.0
    %931 = vmatprep.subr.mxu0 0.0
    %932 = vmatpush2.msra.mxu0 0.0
    %933 = vmatprep.subr.mxu0 0.0
    %934 = vmatpush2.msra.mxu0 0.0
    %935 = vmatprep.subr.mxu0 0.0
    %936 = vmatpush2.msra.mxu0 0.0
    %937 = vmatprep.subr.mxu0 0.0
    %938 = vmatpush2.msra.mxu0 0.0
    %939 = vmatprep.mubr.f32.mxu0 0.0
    %940 = vmatmul.mubr.f32.gmra.mxu0 %v873
    %v941 = vpop.f32.mrf.mxu0
    %v942 = vadd.f32 0.0, %v941
    %v943 = vpop.f32.mrf.mxu0
    %v944 = vadd.f32 0.0, %v943
    %945 = vdwg.mxu0
    %v946 = vadd.f32 %v870, %v942
    %v947 = vadd.f32 %v871, %v944
    %v948 = vxor.u32 %v946, 2147483648
    %v949 = vxor.u32 %v947, 2147483648
    %v950 = vmul.f32 %v948, 1.442695
    %v951 = vpow.pop %v950
    %v952 = vmul.f32 %v949, 1.442695
    %v953 = vpow.pop %v952
    %v954 = vadd.f32 %v951, 1.0
    %v955 = vadd.f32 %v953, 1.0
    %v956 = vrcp.pop %v954
    %v957 = vmul.f32 1.0, %v956
    %v958 = vrcp.pop %v955
    %v959 = vmul.f32 1.0, %v958
    %v960 = vtanh.pop %v947
    %v961 = vmul.f32 %v957, %v863
    %963 = vrot.lane.b32.xlu0 %v960, 64
    %v964 = vpop.permute.xlu0 %963
    %v966 = vmul.f32 %v957, %v964
    %968 = vrot.lane.b32.xlu0 %v966, 64
    %v969 = vpop.permute.xlu0 %968
    %v971 = vadd.f32 %v961, %v969
    %v972 = vtanh.pop %v971
    %974 = vrot.lane.b32.xlu0 %v972, 64
    %v975 = vpop.permute.xlu0 %974
    %v977 = vmul.f32 %v959, %v975
    %v978 = vld [vmem:[#allocation2 + $0x60] sm:$0xff]
    %v979 = vld [vmem:[#allocation2 + $0x68] sm:$0xff]
    %v981 = vsel %vm331, %v977, 0
    %983 = vmatprep.subr.mxu0 0.0
    %984 = vmatpush1.msra.mxu0 0.0
    %985 = vmatprep.subr.mxu0 0.0
    %986 = vmatpush1.msra.mxu0 0.0
    %987 = vmatprep.subr.mxu0 0.0
    %988 = vmatpush1.msra.mxu0 0.0
    %989 = vmatprep.subr.mxu0 0.0
    %990 = vmatpush1.msra.mxu0 0.0
    %991 = vmatprep.subr.mxu0 0.0
    %992 = vmatpush1.msra.mxu0 0.0
    %993 = vmatprep.subr.mxu0 0.0
    %994 = vmatpush1.msra.mxu0 0.0
    %995 = vmatprep.subr.mxu0 0.0
    %996 = vmatpush1.msra.mxu0 0.0
    %997 = vmatprep.subr.mxu0 0.0
    %998 = vmatpush1.msra.mxu0 0.0
    %999 = vmatprep.subr.mxu0 %v328
    %1000 = vmatpush1.msra.mxu0 %v327
    %1001 = vmatprep.subr.mxu0 %v326
    %1002 = vmatpush1.msra.mxu0 %v325
    %1003 = vmatprep.subr.mxu0 %v324
    %1004 = vmatpush1.msra.mxu0 %v323
    %1005 = vmatprep.subr.mxu0 %v322
    %1006 = vmatpush1.msra.mxu0 %v321
    %1007 = vmatprep.subr.mxu0 %v320
    %1008 = vmatpush1.msra.mxu0 %v319
    %1009 = vmatprep.subr.mxu0 %v318
    %1010 = vmatpush1.msra.mxu0 %v317
    %1011 = vmatprep.subr.mxu0 %v316
    %1012 = vmatpush1.msra.mxu0 %v315
    %1013 = vmatprep.subr.mxu0 %v314
    %1014 = vmatpush1.msra.mxu0 %v313
    %1015 = vmatprep.subr.mxu0 0.0
    %1016 = vmatpush2.msra.mxu0 0.0
    %1017 = vmatprep.subr.mxu0 0.0
    %1018 = vmatpush2.msra.mxu0 0.0
    %1019 = vmatprep.subr.mxu0 0.0
    %1020 = vmatpush2.msra.mxu0 0.0
    %1021 = vmatprep.subr.mxu0 0.0
    %1022 = vmatpush2.msra.mxu0 0.0
    %1023 = vmatprep.subr.mxu0 0.0
    %1024 = vmatpush2.msra.mxu0 0.0
    %1025 = vmatprep.subr.mxu0 0.0
    %1026 = vmatpush2.msra.mxu0 0.0
    %1027 = vmatprep.subr.mxu0 0.0
    %1028 = vmatpush2.msra.mxu0 0.0
    %1029 = vmatprep.subr.mxu0 0.0
    %1030 = vmatpush2.msra.mxu0 0.0
    %1031 = vmatprep.subr.mxu0 0.0
    %1032 = vmatpush2.msra.mxu0 0.0
    %1033 = vmatprep.subr.mxu0 0.0
    %1034 = vmatpush2.msra.mxu0 0.0
    %1035 = vmatprep.subr.mxu0 0.0
    %1036 = vmatpush2.msra.mxu0 0.0
    %1037 = vmatprep.subr.mxu0 0.0
    %1038 = vmatpush2.msra.mxu0 0.0
    %1039 = vmatprep.subr.mxu0 0.0
    %1040 = vmatpush2.msra.mxu0 0.0
    %1041 = vmatprep.subr.mxu0 0.0
    %1042 = vmatpush2.msra.mxu0 0.0
    %1043 = vmatprep.subr.mxu0 0.0
    %1044 = vmatpush2.msra.mxu0 0.0
    %1045 = vmatprep.subr.mxu0 0.0
    %1046 = vmatpush2.msra.mxu0 0.0
    %1047 = vmatprep.mubr.f32.mxu0 0.0
    %1048 = vmatmul.mubr.f32.gmra.mxu0 %v981
    %v1049 = vpop.f32.mrf.mxu0
    %v1050 = vadd.f32 0.0, %v1049
    %v1051 = vpop.f32.mrf.mxu0
    %v1052 = vadd.f32 0.0, %v1051
    %1053 = vdwg.mxu0
    %v1054 = vadd.f32 %v978, %v1050
    %v1055 = vadd.f32 %v979, %v1052
    %v1056 = vxor.u32 %v1054, 2147483648
    %v1057 = vxor.u32 %v1055, 2147483648
    %v1058 = vmul.f32 %v1056, 1.442695
    %v1059 = vpow.pop %v1058
    %v1060 = vmul.f32 %v1057, 1.442695
    %v1061 = vpow.pop %v1060
    %v1062 = vadd.f32 %v1059, 1.0
    %v1063 = vadd.f32 %v1061, 1.0
    %v1064 = vrcp.pop %v1062
    %v1065 = vmul.f32 1.0, %v1064
    %v1066 = vrcp.pop %v1063
    %v1067 = vmul.f32 1.0, %v1066
    %v1068 = vtanh.pop %v1055
    %v1069 = vmul.f32 %v1065, %v971
    %1071 = vrot.lane.b32.xlu0 %v1068, 64
    %v1072 = vpop.permute.xlu0 %1071
    %v1074 = vmul.f32 %v1065, %v1072
    %1076 = vrot.lane.b32.xlu0 %v1074, 64
    %v1077 = vpop.permute.xlu0 %1076
    %v1079 = vadd.f32 %v1069, %v1077
    %v1080 = vtanh.pop %v1079
    %1082 = vrot.lane.b32.xlu0 %v1080, 64
    %v1083 = vpop.permute.xlu0 %1082
    %v1085 = vmul.f32 %v1067, %v1083
    %v1086 = vld [vmem:[#allocation2 + $0x70] sm:$0xff]
    %v1087 = vld [vmem:[#allocation2 + $0x78] sm:$0xff]
    %v1089 = vsel %vm331, %v1085, 0
    %1091 = vmatprep.subr.mxu0 0.0
    %1092 = vmatpush1.msra.mxu0 0.0
    %1093 = vmatprep.subr.mxu0 0.0
    %1094 = vmatpush1.msra.mxu0 0.0
    %1095 = vmatprep.subr.mxu0 0.0
    %1096 = vmatpush1.msra.mxu0 0.0
    %1097 = vmatprep.subr.mxu0 0.0
    %1098 = vmatpush1.msra.mxu0 0.0
    %1099 = vmatprep.subr.mxu0 0.0
    %1100 = vmatpush1.msra.mxu0 0.0
    %1101 = vmatprep.subr.mxu0 0.0
    %1102 = vmatpush1.msra.mxu0 0.0
    %1103 = vmatprep.subr.mxu0 0.0
    %1104 = vmatpush1.msra.mxu0 0.0
    %1105 = vmatprep.subr.mxu0 0.0
    %1106 = vmatpush1.msra.mxu0 0.0
    %1107 = vmatprep.subr.mxu0 %v328
    %1108 = vmatpush1.msra.mxu0 %v327
    %1109 = vmatprep.subr.mxu0 %v326
    %1110 = vmatpush1.msra.mxu0 %v325
    %1111 = vmatprep.subr.mxu0 %v324
    %1112 = vmatpush1.msra.mxu0 %v323
    %1113 = vmatprep.subr.mxu0 %v322
    %1114 = vmatpush1.msra.mxu0 %v321
    %1115 = vmatprep.subr.mxu0 %v320
    %1116 = vmatpush1.msra.mxu0 %v319
    %1117 = vmatprep.subr.mxu0 %v318
    %1118 = vmatpush1.msra.mxu0 %v317
    %1119 = vmatprep.subr.mxu0 %v316
    %1120 = vmatpush1.msra.mxu0 %v315
    %1121 = vmatprep.subr.mxu0 %v314
    %1122 = vmatpush1.msra.mxu0 %v313
    %1123 = vmatprep.subr.mxu0 0.0
    %1124 = vmatpush2.msra.mxu0 0.0
    %1125 = vmatprep.subr.mxu0 0.0
    %1126 = vmatpush2.msra.mxu0 0.0
    %1127 = vmatprep.subr.mxu0 0.0
    %1128 = vmatpush2.msra.mxu0 0.0
    %1129 = vmatprep.subr.mxu0 0.0
    %1130 = vmatpush2.msra.mxu0 0.0
    %1131 = vmatprep.subr.mxu0 0.0
    %1132 = vmatpush2.msra.mxu0 0.0
    %1133 = vmatprep.subr.mxu0 0.0
    %1134 = vmatpush2.msra.mxu0 0.0
    %1135 = vmatprep.subr.mxu0 0.0
    %1136 = vmatpush2.msra.mxu0 0.0
    %1137 = vmatprep.subr.mxu0 0.0
    %1138 = vmatpush2.msra.mxu0 0.0
    %1139 = vmatprep.subr.mxu0 0.0
    %1140 = vmatpush2.msra.mxu0 0.0
    %1141 = vmatprep.subr.mxu0 0.0
    %1142 = vmatpush2.msra.mxu0 0.0
    %1143 = vmatprep.subr.mxu0 0.0
    %1144 = vmatpush2.msra.mxu0 0.0
    %1145 = vmatprep.subr.mxu0 0.0
    %1146 = vmatpush2.msra.mxu0 0.0
    %1147 = vmatprep.subr.mxu0 0.0
    %1148 = vmatpush2.msra.mxu0 0.0
    %1149 = vmatprep.subr.mxu0 0.0
    %1150 = vmatpush2.msra.mxu0 0.0
    %1151 = vmatprep.subr.mxu0 0.0
    %1152 = vmatpush2.msra.mxu0 0.0
    %1153 = vmatprep.subr.mxu0 0.0
    %1154 = vmatpush2.msra.mxu0 0.0
    %1155 = vmatprep.mubr.f32.mxu0 0.0
    %1156 = vmatmul.mubr.f32.gmra.mxu0 %v1089
    %v1157 = vpop.f32.mrf.mxu0
    %v1158 = vadd.f32 0.0, %v1157
    %v1159 = vpop.f32.mrf.mxu0
    %v1160 = vadd.f32 0.0, %v1159
    %1161 = vdwg.mxu0
    %v1162 = vadd.f32 %v1086, %v1158
    %v1163 = vadd.f32 %v1087, %v1160
    %v1164 = vxor.u32 %v1162, 2147483648
    %v1165 = vxor.u32 %v1163, 2147483648
    %v1166 = vmul.f32 %v1164, 1.442695
    %v1167 = vpow.pop %v1166
    %v1168 = vmul.f32 %v1165, 1.442695
    %v1169 = vpow.pop %v1168
    %v1170 = vadd.f32 %v1167, 1.0
    %v1171 = vadd.f32 %v1169, 1.0
    %v1172 = vrcp.pop %v1170
    %v1173 = vmul.f32 1.0, %v1172
    %v1174 = vrcp.pop %v1171
    %v1175 = vmul.f32 1.0, %v1174
    %v1176 = vtanh.pop %v1163
    %v1177 = vmul.f32 %v1173, %v1079
    %1179 = vrot.lane.b32.xlu0 %v1176, 64
    %v1180 = vpop.permute.xlu0 %1179
    %v1182 = vmul.f32 %v1173, %v1180
    %1184 = vrot.lane.b32.xlu0 %v1182, 64
    %v1185 = vpop.permute.xlu0 %1184
    %v1187 = vadd.f32 %v1177, %v1185
    %v1188 = vtanh.pop %v1187
    %1190 = vrot.lane.b32.xlu0 %v1188, 64
    %v1191 = vpop.permute.xlu0 %1190
    %v1193 = vmul.f32 %v1175, %v1191
    %1195 = vrot.lane.b32.xlu0 %v1193, 96
    %v1196 = vpop.permute.xlu0 %1195
    %v1198 = vsub.f32 %v1193, %v1196
    %v1199 = vadd.f32 %v1198, 1e-06
    %v1200 = vand.u32 2147483647, %v1199
    %vm1201 = vcmask 261120
    %v1202 = vsel %vm1201, %v1200, 0.0
    %1203 = vadd.xlane.f32.xlu0 %v1202
    %v1204 = vpop.xlane.xlu0 %1203
    %v1205 = vsub.f32 0.0, %v1204
    %v1206 = vmul.f32 %v1205, 1.442695
    %v1207 = vpow.pop %v1206
    %vm1208 = vcmask 1024
    %1209 = vst.msk [vmem:[%s4] sm:$0x3] %vm1208, %v1207
    // Predicated region
    $region30: #{malstm_pallas.1} parent=1 // pred_check
      _
    $region31: #{malstm_pallas.1} parent=1 // pred_check_branch
      %1211 = sbr.rel (0) target = $region33
    $region32: #{malstm_pallas.1} parent=1 // pred_region
      _
    $region33: #{malstm_pallas.1} parent=1 // pred_fallthru
      _
    // Predicated region
    $region34: #{malstm_pallas.1} parent=1 // pred_check
      _
    $region35: #{malstm_pallas.1} parent=1 // pred_check_branch
      %1213 = sbr.rel (0) target = $region37
    $region36: #{malstm_pallas.1} parent=1 // pred_region
      _
    $region37: #{malstm_pallas.1} parent=1 // pred_fallthru
      _
    %1214 = vsyncpa [#allocation4], 1
    %1215 = vsyncpa [#allocation8], 1
    %1216 = vsyncpa [#allocation5], 1

</llo_original>
